<compile_context>
chip_gen: v6e
topology: v6e:2x2x1
jax: 0.10.0
libtpu: 0.0.40
codegen_flags: <defaults>
</compile_context>

<pallas_src>
import functools
import math

import jax
import jax.numpy as jnp
from jax.experimental import pallas as pl
from jax.experimental.pallas import tpu as pltpu

BN_EPS = 1e-5
NEG_BIG = -1e30
VMEM_LIMIT = 32 * 1024 * 1024


def _round_up(x, m):
    return ((x + m - 1) // m) * m


def _pick_points_tile(npad, max_tile=512):
    """npad is a multiple of 128; pick the largest tile in {512,256,128} dividing it."""
    for c in (max_tile, 256, 128):
        if c <= npad and npad % c == 0:
            return c
    return 128


def _default_csplit(batch):
    """Split the 1024-channel output across a parallel grid axis on v7x when B is small."""
    try:
        kind = jax.devices()[0].device_kind.lower()
    except Exception:
        return 1
    if ("v7" in kind or "7x" in kind) and batch < 4:
        return 2
    return 1


# --------------------------------------------------------------------------
# Kernel 1: fused shared-MLP chain + BN (+ReLU) + masked global max-pool.
#   x tile (1, tn, K0) -> [dot -> *scale + shift -> relu?]* -> max over points
#   accumulated directly into the resident output block (B, 1, C_last).
# Grid: (B, csplit, Npad // tn); weights may be per-batch (transform folded).
# --------------------------------------------------------------------------
def _chain_maxpool_kernel(*refs, n_layers, per_batch, relus, tn, n_valid,
                          need_mask):
    x_ref = refs[0]
    o_ref = refs[-1]

    h = x_ref[0]                                   # (tn, K0)
    for li in range(n_layers):
        w_ref = refs[1 + 3 * li]
        s_ref = refs[2 + 3 * li]
        t_ref = refs[3 + 3 * li]
        w = w_ref[0] if per_batch[li] else w_ref[...]
        h = jnp.dot(h.astype(w.dtype), w, preferred_element_type=jnp.float32)
        h = h * s_ref[...] + t_ref[...]            # epilogue in f32 (v5e-safe)
        if relus[li]:
            h = jnp.maximum(h, 0.0)

    nj = pl.program_id(2)
    if need_mask:
        rows = jax.lax.broadcasted_iota(jnp.int32, h.shape, 0) + nj * tn
        h = jnp.where(rows < n_valid, h, NEG_BIG)
    m = jnp.max(h, axis=0, keepdims=True)          # (1, C_blk)

    @pl.when(nj == 0)
    def _():
        o_ref[0] = m

    @pl.when(nj > 0)
    def _():
        o_ref[0] = jnp.maximum(o_ref[0], m)


def chain_maxpool(x, layers, n_valid, *, csplit=1):
    """x: (B, Npad, K0).  layers: list of dicts {w, scale, shift, relu, per_batch}.
    Shared w: (K, C); per-batch w: (B, K, C).  Returns (B, C_last) max-pooled."""
    B, Npad, K0 = x.shape
    n_layers = len(layers)
    C_last = layers[-1]["w"].shape[-1]
    if layers[-1]["per_batch"] or C_last % csplit or (C_last // csplit) % 128:
        csplit = 1
    csz = C_last // csplit

    tn = _pick_points_tile(Npad)
    nb = Npad // tn
    need_mask = (Npad != n_valid)

    in_specs = [pl.BlockSpec((1, tn, K0), lambda b, c, n: (b, n, 0))]
    args = [x]
    per_batch = tuple(bool(l["per_batch"]) for l in layers)
    relus = tuple(bool(l["relu"]) for l in layers)

    for li, l in enumerate(layers):
        w, s, t = l["w"], l["scale"], l["shift"]
        last = (li == n_layers - 1)
        if l["per_batch"]:
            _, K, C = w.shape
            in_specs.append(pl.BlockSpec((1, K, C), lambda b, c, n: (b, 0, 0)))
        else:
            K, C = w.shape
            if last and csplit > 1:
                in_specs.append(pl.BlockSpec((K, csz), lambda b, c, n: (0, c)))
            else:
                in_specs.append(pl.BlockSpec((K, C), lambda b, c, n: (0, 0)))
        if last and csplit > 1:
            in_specs.append(pl.BlockSpec((1, csz), lambda b, c, n: (0, c)))
            in_specs.append(pl.BlockSpec((1, csz), lambda b, c, n: (0, c)))
        else:
            in_specs.append(pl.BlockSpec((1, C), lambda b, c, n: (0, 0)))
            in_specs.append(pl.BlockSpec((1, C), lambda b, c, n: (0, 0)))
        args += [w, s, t]

    out = pl.pallas_call(
        functools.partial(_chain_maxpool_kernel, n_layers=n_layers,
                          per_batch=per_batch, relus=relus, tn=tn,
                          n_valid=n_valid, need_mask=need_mask),
        out_shape=jax.ShapeDtypeStruct((B, 1, C_last), jnp.float32),
        grid=(B, csplit, nb),
        in_specs=in_specs,
        out_specs=pl.BlockSpec((1, 1, csz), lambda b, c, n: (b, 0, c)),
        compiler_params=pltpu.CompilerParams(
            dimension_semantics=("parallel", "parallel", "arbitrary"),
            vmem_limit_bytes=VMEM_LIMIT,
        ),
    )(*args)
    return out.reshape(B, C_last)


# --------------------------------------------------------------------------
# Kernel 2: fused 3-layer FC head (optionally ending in log_softmax)
#   y = (relu((relu(g@W1*s1+t1))@W2*s2+t2))@W3 + t3   [+ log_softmax]
# --------------------------------------------------------------------------
def _head3_kernel(g_ref, w1_ref, s1_ref, t1_ref, w2_ref, s2_ref, t2_ref,
                  w3_ref, t3_ref, o_ref, *, log_sm):
    h = jnp.dot(g_ref[...], w1_ref[...], preferred_element_type=jnp.float32)
    h = jnp.maximum(h * s1_ref[...] + t1_ref[...], 0.0)
    h = jnp.dot(h, w2_ref[...], preferred_element_type=jnp.float32)
    h = jnp.maximum(h * s2_ref[...] + t2_ref[...], 0.0)
    y = jnp.dot(h, w3_ref[...], preferred_element_type=jnp.float32) + t3_ref[...]
    if log_sm:
        m = jnp.max(y, axis=-1, keepdims=True)
        y = y - m
        y = y - jnp.log(jnp.sum(jnp.exp(y), axis=-1, keepdims=True))
    o_ref[...] = y


def fused_head(g, w1, s1, t1, w2, s2, t2, w3, t3, log_sm=False):
    B = g.shape[0]
    Np = w3.shape[1]
    args = (g, w1, s1, t1, w2, s2, t2, w3, t3)
    in_specs = [pl.BlockSpec(a.shape, lambda i: (0, 0)) for a in args]
    return pl.pallas_call(
        functools.partial(_head3_kernel, log_sm=log_sm),
        out_shape=jax.ShapeDtypeStruct((B, Np), jnp.float32),
        grid=(1,),
        in_specs=in_specs,
        out_specs=pl.BlockSpec((B, Np), lambda i: (0, 0)),
        compiler_params=pltpu.CompilerParams(
            dimension_semantics=("arbitrary",),
            vmem_limit_bytes=VMEM_LIMIT,
        ),
    )(*args)


# --------------------------------------------------------------------------
# Parameter init (PyTorch-style uniform fan-in) and eval-mode BN folding.
# --------------------------------------------------------------------------
def init_linear(key, cin, cout):
    kw, kb = jax.random.split(key)
    lim = 1.0 / jnp.sqrt(jnp.float32(cin))
    w = jax.random.uniform(kw, (cin, cout), jnp.float32, -lim, lim)
    b = jax.random.uniform(kb, (cout,), jnp.float32, -lim, lim)
    return w, b


def fold_bias_bn(bias, cout, use_bn=True):
    """Fold bias + eval-mode BatchNorm1d (default running stats) into scale/shift."""
    if use_bn:
        scale = jnp.full((1, cout), 1.0 / math.sqrt(1.0 + BN_EPS), jnp.float32)
    else:
        scale = jnp.ones((1, cout), jnp.float32)
    shift = bias.reshape(1, cout) * scale   # BN beta=0, mean=0 -> only bias*scale
    return scale, shift


def _ss(bias, cout):
    s, t = fold_bias_bn(bias, cout)
    return dict(scale=s, shift=t)


def init_tnet(key, dim):
    keys = jax.random.split(key, 6)
    return {
        "c1": init_linear(keys[0], dim, 64),
        "c2": init_linear(keys[1], 64, 128),
        "c3": init_linear(keys[2], 128, 1024),
        "f1": init_linear(keys[3], 1024, 512),
        "f2": init_linear(keys[4], 512, 256),
        "f3": init_linear(keys[5], 256, dim * dim),
    }


def init_model(key, input_dim=3, k=40):
    keys = jax.random.split(key, 8)
    return {
        "stn": init_tnet(keys[0], input_dim),
        "conv1": init_linear(keys[1], input_dim, 64),
        "fstn": init_tnet(keys[2], 64),
        "conv2": init_linear(keys[3], 64, 128),
        "conv3": init_linear(keys[4], 128, 1024),
        "fc1": init_linear(keys[5], 1024, 512),
        "fc2": init_linear(keys[6], 512, 256),
        "fc3": init_linear(keys[7], 256, k),
    }


def tnet_head(g, p, dim):
    """T-Net FC head: (B,1024) -> (B,dim,dim) transform (identity added)."""
    B = g.shape[0]
    s512, t512 = fold_bias_bn(p["f1"][1], 512)
    s256, t256 = fold_bias_bn(p["f2"][1], 256)
    w3, b3 = p["f3"]
    dd = dim * dim
    ddpad = max(128, _round_up(dd, 128))
    w3p = jnp.pad(w3, ((0, 0), (0, ddpad - dd)))
    ident = jnp.eye(dim, dtype=jnp.float32).reshape(dd)
    t3 = jnp.zeros((1, ddpad), jnp.float32).at[0, :dd].set(b3 + ident)
    out = fused_head(g, p["f1"][0], s512, t512, p["f2"][0], s256, t256, w3p, t3,
                     log_sm=False)
    return out[:, :dd].reshape(B, dim, dim)


# --------------------------------------------------------------------------
# Forward pass
# --------------------------------------------------------------------------
def pointnet_forward(x_bcn, params, input_dim=3, k=40, csplit=None,
                     matmul_dtype=jnp.float32):
    """x_bcn: (B, input_dim, N) — PyTorch layout.  Returns log-probs (B, k)."""
    x = jnp.transpose(x_bcn, (0, 2, 1)).astype(jnp.float32)   # (B, N, C)
    B, N, C = x.shape
    Cp = max(8, _round_up(C, 8))                               # pad 3 -> 8 channels
    Npad = _round_up(N, 128)                                   # lane-friendly points
    x_pad = jnp.pad(x, ((0, 0), (0, Npad - N), (0, Cp - C)))
    x_pad = x_pad.astype(matmul_dtype)
    if csplit is None:
        csplit = _default_csplit(B)

    p = params
    stn, fstn = p["stn"], p["fstn"]
    cast = lambda w: w.astype(matmul_dtype)

    # ---- STN chain: raw points -> (B, 1024) global feature (one kernel) ----
    w1s = jnp.pad(stn["c1"][0], ((0, Cp - C), (0, 0)))         # (Cp, 64)
    stn_layers = [
        dict(w=cast(w1s), relu=True, per_batch=False, **_ss(stn["c1"][1], 64)),
        dict(w=cast(stn["c2"][0]), relu=True, per_batch=False, **_ss(stn["c2"][1], 128)),
        dict(w=cast(stn["c3"][0]), relu=True, per_batch=False, **_ss(stn["c3"][1], 1024)),
    ]
    g_stn = chain_maxpool(x_pad, stn_layers, N, csplit=csplit)
    trans = tnet_head(g_stn, stn, C)                           # (B, C, C)

    # conv1 with the input transform folded in: (x @ T) @ W1 == x @ (T @ W1)
    w1f = jnp.einsum("bij,jk->bik", trans, p["conv1"][0])      # (B, C, 64)
    w1f = cast(jnp.pad(w1f, ((0, 0), (0, Cp - C), (0, 0))))    # (B, Cp, 64)
    s1c, t1c = fold_bias_bn(p["conv1"][1], 64)

    # ---- FSTN chain: conv1 recomputed in-kernel (never materialized) ----
    fstn_layers = [
        dict(w=w1f, scale=s1c, shift=t1c, relu=True, per_batch=True),
        dict(w=cast(fstn["c1"][0]), relu=True, per_batch=False, **_ss(fstn["c1"][1], 64)),
        dict(w=cast(fstn["c2"][0]), relu=True, per_batch=False, **_ss(fstn["c2"][1], 128)),
        dict(w=cast(fstn["c3"][0]), relu=True, per_batch=False, **_ss(fstn["c3"][1], 1024)),
    ]
    g_fstn = chain_maxpool(x_pad, fstn_layers, N, csplit=csplit)
    trans_feat = tnet_head(g_fstn, fstn, 64)                   # (B, 64, 64)

    # conv2 with the feature transform folded in
    w2f = cast(jnp.einsum("bij,jk->bik", trans_feat, p["conv2"][0]))  # (B, 64, 128)
    s2c, t2c = fold_bias_bn(p["conv2"][1], 128)
    s3c, t3c = fold_bias_bn(p["conv3"][1], 1024)

    # ---- main encoder chain: conv1 -> conv2 -> conv3(+BN, no ReLU) -> max-pool
    main_layers = [
        dict(w=w1f, scale=s1c, shift=t1c, relu=True, per_batch=True),
        dict(w=w2f, scale=s2c, shift=t2c, relu=True, per_batch=True),
        dict(w=cast(p["conv3"][0]), scale=s3c, shift=t3c, relu=False, per_batch=False),
    ]
    gfeat = chain_maxpool(x_pad, main_layers, N, csplit=csplit)  # (B, 1024)

    # ---- classification head: fc1 -> fc2 -> fc3 -> log_softmax (dropout = id) ----
    s512, t512 = fold_bias_bn(p["fc1"][1], 512)
    s256, t256 = fold_bias_bn(p["fc2"][1], 256)
    w3, b3 = p["fc3"]
    kpad = max(128, _round_up(k, 128))
    w3p = jnp.pad(w3, ((0, 0), (0, kpad - k)))
    t3 = jnp.full((1, kpad), NEG_BIG, jnp.float32).at[0, :k].set(b3)  # mask pad lanes
    y = fused_head(gfeat, p["fc1"][0], s512, t512,
                   p["fc2"][0], s256, t256, w3p, t3, log_sm=True)
    return y[:, :k]


# --------------------------------------------------------------------------
if __name__ == "__main__":
    B, INPUT_DIM, NUM_POINTS, K = 2, 3, 64, 16   # small demo shapes
    key = jax.random.PRNGKey(0)
    kp, kx = jax.random.split(key)

    params = init_model(kp, input_dim=INPUT_DIM, k=K)
    x = jax.random.normal(kx, (B, INPUT_DIM, NUM_POINTS), dtype=jnp.float32)

    out = pointnet_forward(x, params, input_dim=INPUT_DIM, k=K)
    out = jax.block_until_ready(out)

    assert out.shape == (B, K), out.shape
    assert bool(jnp.all(jnp.isfinite(out)))
    # log_softmax rows must sum to ~1 in prob space
    assert bool(jnp.allclose(jnp.sum(jnp.exp(out), axis=-1), 1.0, atol=1e-4))
    print("KERNEL_OK")
</pallas_src>

<mosaic_0001>
module attributes {stable_mosaic.version = 11 : i64} {
  func.func @_chain_maxpool_kernel(%arg0: i32, %arg1: i32, %arg2: i32, %arg3: memref<1x128x8xf32, #tpu.memory_space<vmem>>, %arg4: memref<8x64xf32, #tpu.memory_space<vmem>>, %arg5: memref<1x64xf32, #tpu.memory_space<vmem>>, %arg6: memref<1x64xf32, #tpu.memory_space<vmem>>, %arg7: memref<64x128xf32, #tpu.memory_space<vmem>>, %arg8: memref<1x128xf32, #tpu.memory_space<vmem>>, %arg9: memref<1x128xf32, #tpu.memory_space<vmem>>, %arg10: memref<128x1024xf32, #tpu.memory_space<vmem>>, %arg11: memref<1x1024xf32, #tpu.memory_space<vmem>>, %arg12: memref<1x1024xf32, #tpu.memory_space<vmem>>, %arg13: memref<1x1x1024xf32, #tpu.memory_space<vmem>>) attributes {dimension_semantics = [#tpu.dimension_semantics<parallel>, #tpu.dimension_semantics<parallel>, #tpu.dimension_semantics<arbitrary>], iteration_bounds = array<i64: 2, 1, 1>, scalar_prefetch = 0 : i64, scratch_operands = 0 : i64, tpu.core_type = #tpu.core_type<tc>, window_params = [{transform_indices = @transform_0, window_bounds = array<i64: 1, 128, 8>}, {pipeline_mode = #tpu.pipeline_mode<synchronous>, transform_indices = @transform_1, window_bounds = array<i64: 8, 64>}, {pipeline_mode = #tpu.pipeline_mode<synchronous>, transform_indices = @transform_2, window_bounds = array<i64: 1, 64>}, {pipeline_mode = #tpu.pipeline_mode<synchronous>, transform_indices = @transform_3, window_bounds = array<i64: 1, 64>}, {pipeline_mode = #tpu.pipeline_mode<synchronous>, transform_indices = @transform_4, window_bounds = array<i64: 64, 128>}, {pipeline_mode = #tpu.pipeline_mode<synchronous>, transform_indices = @transform_5, window_bounds = array<i64: 1, 128>}, {pipeline_mode = #tpu.pipeline_mode<synchronous>, transform_indices = @transform_6, window_bounds = array<i64: 1, 128>}, {pipeline_mode = #tpu.pipeline_mode<synchronous>, transform_indices = @transform_7, window_bounds = array<i64: 128, 1024>}, {pipeline_mode = #tpu.pipeline_mode<synchronous>, transform_indices = @transform_8, window_bounds = array<i64: 1, 1024>}, {pipeline_mode = #tpu.pipeline_mode<synchronous>, transform_indices = @transform_9, window_bounds = array<i64: 1, 1024>}, {transform_indices = @transform_10, window_bounds = array<i64: 1, 1, 1024>}]} {
    %c0 = arith.constant 0 : index
    %c0_0 = arith.constant 0 : index
    %c0_1 = arith.constant 0 : index
    %0 = vector.load %arg3[%c0, %c0_0, %c0_1] : memref<1x128x8xf32, #tpu.memory_space<vmem>>, vector<1x128x8xf32>
    %1 = vector.shape_cast %0 : vector<1x128x8xf32> to vector<128x8xf32>
    %c0_2 = arith.constant 0 : index
    %c0_3 = arith.constant 0 : index
    %2 = vector.load %arg4[%c0_2, %c0_3] : memref<8x64xf32, #tpu.memory_space<vmem>>, vector<8x64xf32>
    %cst = arith.constant dense<0.000000e+00> : vector<128x64xf32>
    %3 = tpu.matmul %1, %2, %cst {dimension_numbers = #tpu.dot_dimension_numbers<[1], [0], [0], [1], [0, 0, 1, 1], [], []>} : vector<128x8xf32>, vector<8x64xf32>, vector<128x64xf32> -> vector<128x64xf32>
    %c0_4 = arith.constant 0 : index
    %c0_5 = arith.constant 0 : index
    %4 = vector.load %arg5[%c0_4, %c0_5] : memref<1x64xf32, #tpu.memory_space<vmem>>, vector<1x64xf32>
    %5 = vector.broadcast %4 : vector<1x64xf32> to vector<128x64xf32>
    %6 = arith.mulf %3, %5 : vector<128x64xf32>
    %c0_6 = arith.constant 0 : index
    %c0_7 = arith.constant 0 : index
    %7 = vector.load %arg6[%c0_6, %c0_7] : memref<1x64xf32, #tpu.memory_space<vmem>>, vector<1x64xf32>
    %8 = vector.broadcast %7 : vector<1x64xf32> to vector<128x64xf32>
    %9 = arith.addf %6, %8 : vector<128x64xf32>
    %cst_8 = arith.constant 0.000000e+00 : f32
    %10 = vector.broadcast %cst_8 : f32 to vector<128x64xf32>
    %11 = arith.maximumf %9, %10 : vector<128x64xf32>
    %c0_9 = arith.constant 0 : index
    %c0_10 = arith.constant 0 : index
    %12 = vector.load %arg7[%c0_9, %c0_10] : memref<64x128xf32, #tpu.memory_space<vmem>>, vector<64x128xf32>
    %cst_11 = arith.constant dense<0.000000e+00> : vector<128x128xf32>
    %13 = tpu.matmul %11, %12, %cst_11 {dimension_numbers = #tpu.dot_dimension_numbers<[1], [0], [0], [1], [0, 0, 1, 1], [], []>} : vector<128x64xf32>, vector<64x128xf32>, vector<128x128xf32> -> vector<128x128xf32>
    %c0_12 = arith.constant 0 : index
    %c0_13 = arith.constant 0 : index
    %14 = vector.load %arg8[%c0_12, %c0_13] : memref<1x128xf32, #tpu.memory_space<vmem>>, vector<1x128xf32>
    %15 = vector.broadcast %14 : vector<1x128xf32> to vector<128x128xf32>
    %16 = arith.mulf %13, %15 : vector<128x128xf32>
    %c0_14 = arith.constant 0 : index
    %c0_15 = arith.constant 0 : index
    %17 = vector.load %arg9[%c0_14, %c0_15] : memref<1x128xf32, #tpu.memory_space<vmem>>, vector<1x128xf32>
    %18 = vector.broadcast %17 : vector<1x128xf32> to vector<128x128xf32>
    %19 = arith.addf %16, %18 : vector<128x128xf32>
    %cst_16 = arith.constant 0.000000e+00 : f32
    %20 = vector.broadcast %cst_16 : f32 to vector<128x128xf32>
    %21 = arith.maximumf %19, %20 : vector<128x128xf32>
    %c0_17 = arith.constant 0 : index
    %c0_18 = arith.constant 0 : index
    %22 = vector.load %arg10[%c0_17, %c0_18] : memref<128x1024xf32, #tpu.memory_space<vmem>>, vector<128x1024xf32>
    %cst_19 = arith.constant dense<0.000000e+00> : vector<128x1024xf32>
    %23 = tpu.matmul %21, %22, %cst_19 {dimension_numbers = #tpu.dot_dimension_numbers<[1], [0], [0], [1], [0, 0, 1, 1], [], []>} : vector<128x128xf32>, vector<128x1024xf32>, vector<128x1024xf32> -> vector<128x1024xf32>
    %c0_20 = arith.constant 0 : index
    %c0_21 = arith.constant 0 : index
    %24 = vector.load %arg11[%c0_20, %c0_21] : memref<1x1024xf32, #tpu.memory_space<vmem>>, vector<1x1024xf32>
    %25 = vector.broadcast %24 : vector<1x1024xf32> to vector<128x1024xf32>
    %26 = arith.mulf %23, %25 : vector<128x1024xf32>
    %c0_22 = arith.constant 0 : index
    %c0_23 = arith.constant 0 : index
    %27 = vector.load %arg12[%c0_22, %c0_23] : memref<1x1024xf32, #tpu.memory_space<vmem>>, vector<1x1024xf32>
    %28 = vector.broadcast %27 : vector<1x1024xf32> to vector<128x1024xf32>
    %29 = arith.addf %26, %28 : vector<128x1024xf32>
    %cst_24 = arith.constant 0.000000e+00 : f32
    %30 = vector.broadcast %cst_24 : f32 to vector<128x1024xf32>
    %31 = arith.maximumf %29, %30 : vector<128x1024xf32>
    %32 = tpu.iota {dimensions = array<i32: 0>} : vector<128x1024xi32>
    %c128_i32 = arith.constant 128 : i32
    %33 = arith.muli %arg2, %c128_i32 : i32
    %34 = vector.broadcast %33 : i32 to vector<128x1024xi32>
    %35 = arith.addi %32, %34 : vector<128x1024xi32>
    %c64_i32 = arith.constant 64 : i32
    %36 = vector.broadcast %c64_i32 : i32 to vector<128x1024xi32>
    %37 = arith.cmpi slt, %35, %36 : vector<128x1024xi32>
    %cst_25 = arith.constant -1.000000e+30 : f32
    %38 = vector.broadcast %cst_25 : f32 to vector<128x1024xf32>
    %39 = arith.select %37, %31, %38 : vector<128x1024xi1>, vector<128x1024xf32>
    %cst_26 = arith.constant dense<0xFF800000> : vector<1024xf32>
    %40 = vector.multi_reduction <maximumf>, %39, %cst_26 [0] : vector<128x1024xf32> to vector<1024xf32>
    %41 = vector.shape_cast %40 : vector<1024xf32> to vector<1x1024xf32>
    %c0_i32 = arith.constant 0 : i32
    %42 = arith.cmpi eq, %arg2, %c0_i32 : i32
    %43 = arith.extui %42 : i1 to i32
    %c0_i32_27 = arith.constant 0 : i32
    %44 = arith.cmpi ne, %43, %c0_i32_27 : i32
    scf.if %44 {
      %c0_30 = arith.constant 0 : index
      %c0_31 = arith.constant 0 : index
      %c0_32 = arith.constant 0 : index
      %48 = vector.load %arg13[%c0_30, %c0_31, %c0_32] : memref<1x1x1024xf32, #tpu.memory_space<vmem>>, vector<1x1x1024xf32>
      %49 = vector.shape_cast %48 : vector<1x1x1024xf32> to vector<1x1024xf32>
      %50 = vector.shape_cast %41 : vector<1x1024xf32> to vector<1x1x1024xf32>
      tpu.vector_store %arg13[%c0_30, %c0_31, %c0_32], %50 {strides = array<i32>} : memref<1x1x1024xf32, #tpu.memory_space<vmem>>, vector<1x1x1024xf32>,
    } else {
    }
    %c0_i32_28 = arith.constant 0 : i32
    %45 = arith.cmpi sgt, %arg2, %c0_i32_28 : i32
    %46 = arith.extui %45 : i1 to i32
    %c0_i32_29 = arith.constant 0 : i32
    %47 = arith.cmpi ne, %46, %c0_i32_29 : i32
    scf.if %47 {
      %c0_30 = arith.constant 0 : index
      %c0_31 = arith.constant 0 : index
      %c0_32 = arith.constant 0 : index
      %48 = vector.load %arg13[%c0_30, %c0_31, %c0_32] : memref<1x1x1024xf32, #tpu.memory_space<vmem>>, vector<1x1x1024xf32>
      %49 = vector.shape_cast %48 : vector<1x1x1024xf32> to vector<1x1024xf32>
      %50 = arith.maximumf %49, %41 : vector<1x1024xf32>
      %c0_33 = arith.constant 0 : index
      %c0_34 = arith.constant 0 : index
      %c0_35 = arith.constant 0 : index
      %51 = vector.load %arg13[%c0_33, %c0_34, %c0_35] : memref<1x1x1024xf32, #tpu.memory_space<vmem>>, vector<1x1x1024xf32>
      %52 = vector.shape_cast %51 : vector<1x1x1024xf32> to vector<1x1024xf32>
      %53 = vector.shape_cast %50 : vector<1x1024xf32> to vector<1x1x1024xf32>
      tpu.vector_store %arg13[%c0_33, %c0_34, %c0_35], %53 {strides = array<i32>} : memref<1x1x1024xf32, #tpu.memory_space<vmem>>, vector<1x1x1024xf32>,
    } else {
    }
    return
  }
  func.func @transform_0(%arg0: i32, %arg1: i32, %arg2: i32) -> (i32, i32, i32) {
    %c0_i32 = arith.constant 0 : i32
    %c0_i32_0 = arith.constant 0 : i32
    return %arg0, %arg2, %c0_i32 : i32, i32, i32
  }
  func.func @transform_1(%arg0: i32, %arg1: i32, %arg2: i32) -> (i32, i32) {
    %c0_i32 = arith.constant 0 : i32
    %c0_i32_0 = arith.constant 0 : i32
    %c0_i32_1 = arith.constant 0 : i32
    return %c0_i32, %c0_i32_0 : i32, i32
  }
  func.func @transform_2(%arg0: i32, %arg1: i32, %arg2: i32) -> (i32, i32) {
    %c0_i32 = arith.constant 0 : i32
    %c0_i32_0 = arith.constant 0 : i32
    %c0_i32_1 = arith.constant 0 : i32
    return %c0_i32, %c0_i32_0 : i32, i32
  }
  func.func @transform_3(%arg0: i32, %arg1: i32, %arg2: i32) -> (i32, i32) {
    %c0_i32 = arith.constant 0 : i32
    %c0_i32_0 = arith.constant 0 : i32
    %c0_i32_1 = arith.constant 0 : i32
    return %c0_i32, %c0_i32_0 : i32, i32
  }
  func.func @transform_4(%arg0: i32, %arg1: i32, %arg2: i32) -> (i32, i32) {
    %c0_i32 = arith.constant 0 : i32
    %c0_i32_0 = arith.constant 0 : i32
    %c0_i32_1 = arith.constant 0 : i32
    return %c0_i32, %c0_i32_0 : i32, i32
  }
  func.func @transform_5(%arg0: i32, %arg1: i32, %arg2: i32) -> (i32, i32) {
    %c0_i32 = arith.constant 0 : i32
    %c0_i32_0 = arith.constant 0 : i32
    %c0_i32_1 = arith.constant 0 : i32
    return %c0_i32, %c0_i32_0 : i32, i32
  }
  func.func @transform_6(%arg0: i32, %arg1: i32, %arg2: i32) -> (i32, i32) {
    %c0_i32 = arith.constant 0 : i32
    %c0_i32_0 = arith.constant 0 : i32
    %c0_i32_1 = arith.constant 0 : i32
    return %c0_i32, %c0_i32_0 : i32, i32
  }
  func.func @transform_7(%arg0: i32, %arg1: i32, %arg2: i32) -> (i32, i32) {
    %c0_i32 = arith.constant 0 : i32
    %c0_i32_0 = arith.constant 0 : i32
    %c0_i32_1 = arith.constant 0 : i32
    return %c0_i32, %c0_i32_0 : i32, i32
  }
  func.func @transform_8(%arg0: i32, %arg1: i32, %arg2: i32) -> (i32, i32) {
    %c0_i32 = arith.constant 0 : i32
    %c0_i32_0 = arith.constant 0 : i32
    %c0_i32_1 = arith.constant 0 : i32
    return %c0_i32, %c0_i32_0 : i32, i32
  }
  func.func @transform_9(%arg0: i32, %arg1: i32, %arg2: i32) -> (i32, i32) {
    %c0_i32 = arith.constant 0 : i32
    %c0_i32_0 = arith.constant 0 : i32
    %c0_i32_1 = arith.constant 0 : i32
    return %c0_i32, %c0_i32_0 : i32, i32
  }
  func.func @transform_10(%arg0: i32, %arg1: i32, %arg2: i32) -> (i32, i32, i32) {
    %c0_i32 = arith.constant 0 : i32
    %c0_i32_0 = arith.constant 0 : i32
    return %arg0, %c0_i32, %arg1 : i32, i32, i32
  }
}

</mosaic_0001>

<llo_original>
// kernel: tpu_custom_call.1
$region0: #{tpu_custom_call.1}
  #allocation0 [shape = 'u32[]', space=smem, size = 0x4, offset = 0x4, fixed_abs, tag = 'smem constant byte address 0x4 - core index']
  #allocation1 [shape = 'u32[144,128]{1,0:T(1,128)}', space=vmem, size = 0x12000, scoped, tag = 'internal scratch']
  %s0 = inlined_call_operand.vmem [shape: f32[2,128,8], index: 0, kind: input, shape index: {}]
  %s1 = inlined_call_operand.vmem [shape: f32[8,64], index: 1, kind: input, shape index: {}]
  %s2 = inlined_call_operand.vmem [shape: f32[1,64], index: 2, kind: input, shape index: {}]
  %s3 = inlined_call_operand.vmem [shape: f32[1,64], index: 3, kind: input, shape index: {}]
  %s4 = inlined_call_operand.vmem [shape: f32[64,128], index: 4, kind: input, shape index: {}]
  %s5 = inlined_call_operand.vmem [shape: f32[1,128], index: 5, kind: input, shape index: {}]
  %s6 = inlined_call_operand.vmem [shape: f32[1,128], index: 6, kind: input, shape index: {}]
  %s7 = inlined_call_operand.hbm [shape: f32[128,1024], index: 7, kind: input, shape index: {}]
  %s8 = inlined_call_operand.vmem [shape: f32[1,1024], index: 8, kind: input, shape index: {}]
  %s9 = inlined_call_operand.vmem [shape: f32[1,1024], index: 9, kind: input, shape index: {}]
  %s10 = inlined_call_operand.hbm [shape: f32[2,1,1024], index: 10, kind: output, shape index: {}]
  %s11 = sld [smem:[#allocation0]]
  $region85: #{tpu_custom_call.1} parent=0
    _
  %s13 = ssub.s32 1, %s11
  %s14 = scalar_select 0, %s13, %s11
  $region1: #{tpu_custom_call.1} parent=0
    #allocation2 [shape = 'u8[524288]{0}', space=vmem, size = 0x80000, scoped, tag = 'input window, operand 7, single buffered']
    #allocation3 [shape = 's32[2]{0}', space=sflag, size = 0x8, scoped, tag = 'scoped memory for tpu_custom_call.1']
    #allocation4 [shape = 's32[2]{0}', space=sflag, size = 0x8, scoped, tag = 'scoped memory for tpu_custom_call.1']
    #allocation5 [shape = 'u8[8192]{0}', space=vmem, size = 0x2000, scoped, tag = 'output window, operand 0']
    %15 = vsyncpa [#allocation3], 0
    %16 = vsyncpa [#allocation4], 0
    %s17 = scalar_lea.sflag [#allocation4], 1
    %18 = vsyncpa %s17, 0
    loop: start=0, step=1, limit=4
    $region2: #{tpu_custom_call.1} parent=1 // loop_pre_header
      _
    $region3: #{tpu_custom_call.1} parent=1 // loop_header
      %s20 = sphi 0, %s24
      %p21 = scmp.ge.s32.totalorder %s20, 4
      %s27 = sphi 0, %s46
      %s28 = sphi 0, %s42
      %s29 = sphi 0, %s38
      %s30 = sphi 0, %s27
      %s31 = sphi 0, %s28
      %s32 = sphi 0, %s29
      %s33 = sphi 0, %s30
      %s34 = sphi 0, %s31
      %s35 = sphi 0, %s32
      %s51 = sphi 0, %s53
      %s54 = sphi 0, %s51
      %s55 = sphi 0, %s54
      %s71 = sphi 0, %s55
      %s75 = sphi 0, %s75
      %s77 = sphi 0, %s75
      %s78 = sphi 0, %s77
      %s92 = sphi 0, %s78
      %s96 = sphi 0, %s96
      %s98 = sphi 0, %s96
      %s99 = sphi 0, %s98
      %s113 = sphi 0, %s99
      %s117 = sphi 0, %s117
      %s119 = sphi 0, %s117
      %s120 = sphi 0, %s119
      %s134 = sphi 0, %s120
      %s138 = sphi 0, %s138
      %s140 = sphi 0, %s138
      %s141 = sphi 0, %s140
      %s155 = sphi 0, %s141
      %s159 = sphi 0, %s159
      %s161 = sphi 0, %s159
      %s162 = sphi 0, %s161
      %s176 = sphi 0, %s162
      %s180 = sphi 0, %s180
      %s182 = sphi 0, %s180
      %s183 = sphi 0, %s182
      %s197 = sphi 0, %s183
      %s201 = sphi 0, %s201
      %s203 = sphi 0, %s201
      %s204 = sphi 0, %s203
      %s218 = sphi 0, %s204
      %s222 = sphi 0, %s222
      %s224 = sphi 0, %s222
      %s225 = sphi 0, %s224
      %s239 = sphi 0, %s225
      %s243 = sphi 0, %s243
      %s245 = sphi 0, %s243
      %s246 = sphi 0, %s245
      %s260 = sphi 0, %s246
      %s268 = sphi 0, %s270
      %s271 = sphi 0, %s268
      %s272 = sphi 0, %s271
      %s288 = sphi 0, %s272
    $region4: #{tpu_custom_call.1} parent=1 // loop_header_branch
      %23 = sbr.rel (%p21) target = $region8
    $region5: #{tpu_custom_call.1} parent=1 // loop_body
      %s25 = ssub.s32 %s20, 1
      %s26 = ssub.s32 %s20, 2
      %s36 = sadd.s32 1, %s29
      %p37 = scmp.ge.s32.totalorder %s36, 1
      %s38 = scalar_select %p37, 0, %s36
      %s39 = sadd.s32 1, %s28
      %s40 = scalar_select %p37, %s39, %s28
      %p41 = scmp.ge.s32.totalorder %s40, 1
      %s42 = scalar_select %p41, 0, %s40
      %s43 = sadd.s32 1, %s27
      %s44 = scalar_select %p41, %s43, %s27
      %p45 = scmp.ge.s32.totalorder %s44, 2
      %s46 = scalar_select %p45, 0, %s44
      %s47 = ssub.s32 %s27, %s46
      %s48 = ssub.s32 %s29, %s38
      %s49 = sor.u32 %s47, %s48
      %p50 = scmp.eq.s32.totalorder %s49, 0
      %s52 = sadd.s32 %s51, 1
      %s53 = scalar_select %p50, %s51, %s52
      %p56 = pneg %p50
      %p57 = scmp.eq.s32.totalorder %s20, 1
      %p58 = por %p56, %p57
      %p59 = scmp.ne.s32.totalorder %s51, %s54
      %p60 = scmp.eq.s32.totalorder %s20, 0
      %p61 = por %p59, %p60
      %p62 = scmp.ne.s32.totalorder %s51, %s54
      %p63 = scmp.eq.s32.totalorder %s25, 1
      %p64 = por %p62, %p63
      %p65 = scmp.ne.s32.totalorder %s54, %s55
      %p66 = scmp.eq.s32.totalorder %s25, 0
      %p67 = por %p65, %p66
      %p68 = scmp.ne.s32.totalorder %s54, %s55
      %p69 = scmp.eq.s32.totalorder %s26, 1
      %p70 = por %p68, %p69
      %p72 = scmp.ne.s32.totalorder %s55, %s71
      %p73 = scmp.eq.s32.totalorder %s26, 0
      %p74 = por %p72, %p73
      %s76 = sadd.s32 %s75, 1
      %p79 = scmp.eq.s32.totalorder %s20, 1
      %p80 = scmp.ne.s32.totalorder %s75, %s77
      %p81 = scmp.eq.s32.totalorder %s20, 0
      %p82 = por %p80, %p81
      %p83 = scmp.ne.s32.totalorder %s75, %s77
      %p84 = scmp.eq.s32.totalorder %s25, 1
      %p85 = por %p83, %p84
      %p86 = scmp.ne.s32.totalorder %s77, %s78
      %p87 = scmp.eq.s32.totalorder %s25, 0
      %p88 = por %p86, %p87
      %p89 = scmp.ne.s32.totalorder %s77, %s78
      %p90 = scmp.eq.s32.totalorder %s26, 1
      %p91 = por %p89, %p90
      %p93 = scmp.ne.s32.totalorder %s78, %s92
      %p94 = scmp.eq.s32.totalorder %s26, 0
      %p95 = por %p93, %p94
      %s97 = sadd.s32 %s96, 1
      %p100 = scmp.eq.s32.totalorder %s20, 1
      %p101 = scmp.ne.s32.totalorder %s96, %s98
      %p102 = scmp.eq.s32.totalorder %s20, 0
      %p103 = por %p101, %p102
      %p104 = scmp.ne.s32.totalorder %s96, %s98
      %p105 = scmp.eq.s32.totalorder %s25, 1
      %p106 = por %p104, %p105
      %p107 = scmp.ne.s32.totalorder %s98, %s99
      %p108 = scmp.eq.s32.totalorder %s25, 0
      %p109 = por %p107, %p108
      %p110 = scmp.ne.s32.totalorder %s98, %s99
      %p111 = scmp.eq.s32.totalorder %s26, 1
      %p112 = por %p110, %p111
      %p114 = scmp.ne.s32.totalorder %s99, %s113
      %p115 = scmp.eq.s32.totalorder %s26, 0
      %p116 = por %p114, %p115
      %s118 = sadd.s32 %s117, 1
      %p121 = scmp.eq.s32.totalorder %s20, 1
      %p122 = scmp.ne.s32.totalorder %s117, %s119
      %p123 = scmp.eq.s32.totalorder %s20, 0
      %p124 = por %p122, %p123
      %p125 = scmp.ne.s32.totalorder %s117, %s119
      %p126 = scmp.eq.s32.totalorder %s25, 1
      %p127 = por %p125, %p126
      %p128 = scmp.ne.s32.totalorder %s119, %s120
      %p129 = scmp.eq.s32.totalorder %s25, 0
      %p130 = por %p128, %p129
      %p131 = scmp.ne.s32.totalorder %s119, %s120
      %p132 = scmp.eq.s32.totalorder %s26, 1
      %p133 = por %p131, %p132
      %p135 = scmp.ne.s32.totalorder %s120, %s134
      %p136 = scmp.eq.s32.totalorder %s26, 0
      %p137 = por %p135, %p136
      %s139 = sadd.s32 %s138, 1
      %p142 = scmp.eq.s32.totalorder %s20, 1
      %p143 = scmp.ne.s32.totalorder %s138, %s140
      %p144 = scmp.eq.s32.totalorder %s20, 0
      %p145 = por %p143, %p144
      %p146 = scmp.ne.s32.totalorder %s138, %s140
      %p147 = scmp.eq.s32.totalorder %s25, 1
      %p148 = por %p146, %p147
      %p149 = scmp.ne.s32.totalorder %s140, %s141
      %p150 = scmp.eq.s32.totalorder %s25, 0
      %p151 = por %p149, %p150
      %p152 = scmp.ne.s32.totalorder %s140, %s141
      %p153 = scmp.eq.s32.totalorder %s26, 1
      %p154 = por %p152, %p153
      %p156 = scmp.ne.s32.totalorder %s141, %s155
      %p157 = scmp.eq.s32.totalorder %s26, 0
      %p158 = por %p156, %p157
      %s160 = sadd.s32 %s159, 1
      %p163 = scmp.eq.s32.totalorder %s20, 1
      %p164 = scmp.ne.s32.totalorder %s159, %s161
      %p165 = scmp.eq.s32.totalorder %s20, 0
      %p166 = por %p164, %p165
      %p167 = scmp.ne.s32.totalorder %s159, %s161
      %p168 = scmp.eq.s32.totalorder %s25, 1
      %p169 = por %p167, %p168
      %p170 = scmp.ne.s32.totalorder %s161, %s162
      %p171 = scmp.eq.s32.totalorder %s25, 0
      %p172 = por %p170, %p171
      %p173 = scmp.ne.s32.totalorder %s161, %s162
      %p174 = scmp.eq.s32.totalorder %s26, 1
      %p175 = por %p173, %p174
      %p177 = scmp.ne.s32.totalorder %s162, %s176
      %p178 = scmp.eq.s32.totalorder %s26, 0
      %p179 = por %p177, %p178
      %s181 = sadd.s32 %s180, 1
      %p184 = scmp.eq.s32.totalorder %s20, 1
      %p185 = scmp.ne.s32.totalorder %s180, %s182
      %p186 = scmp.eq.s32.totalorder %s20, 0
      %p187 = por %p185, %p186
      %p188 = scmp.ne.s32.totalorder %s180, %s182
      %p189 = scmp.eq.s32.totalorder %s25, 1
      %p190 = por %p188, %p189
      %p191 = scmp.ne.s32.totalorder %s182, %s183
      %p192 = scmp.eq.s32.totalorder %s25, 0
      %p193 = por %p191, %p192
      %p194 = scmp.ne.s32.totalorder %s182, %s183
      %p195 = scmp.eq.s32.totalorder %s26, 1
      %p196 = por %p194, %p195
      %p198 = scmp.ne.s32.totalorder %s183, %s197
      %p199 = scmp.eq.s32.totalorder %s26, 0
      %p200 = por %p198, %p199
      %s202 = sadd.s32 %s201, 1
      %p205 = scmp.eq.s32.totalorder %s20, 1
      %p206 = scmp.ne.s32.totalorder %s201, %s203
      %p207 = scmp.eq.s32.totalorder %s20, 0
      %p208 = por %p206, %p207
      %p209 = scmp.ne.s32.totalorder %s201, %s203
      %p210 = scmp.eq.s32.totalorder %s25, 1
      %p211 = por %p209, %p210
      %p212 = scmp.ne.s32.totalorder %s203, %s204
      %p213 = scmp.eq.s32.totalorder %s25, 0
      %p214 = por %p212, %p213
      %p215 = scmp.ne.s32.totalorder %s203, %s204
      %p216 = scmp.eq.s32.totalorder %s26, 1
      %p217 = por %p215, %p216
      %p219 = scmp.ne.s32.totalorder %s204, %s218
      %p220 = scmp.eq.s32.totalorder %s26, 0
      %p221 = por %p219, %p220
      %s223 = sadd.s32 %s222, 1
      %p226 = scmp.eq.s32.totalorder %s20, 1
      %p227 = scmp.ne.s32.totalorder %s222, %s224
      %p228 = scmp.eq.s32.totalorder %s20, 0
      %p229 = por %p227, %p228
      %p230 = scmp.ne.s32.totalorder %s222, %s224
      %p231 = scmp.eq.s32.totalorder %s25, 1
      %p232 = por %p230, %p231
      %p233 = scmp.ne.s32.totalorder %s224, %s225
      %p234 = scmp.eq.s32.totalorder %s25, 0
      %p235 = por %p233, %p234
      %p236 = scmp.ne.s32.totalorder %s224, %s225
      %p237 = scmp.eq.s32.totalorder %s26, 1
      %p238 = por %p236, %p237
      %p240 = scmp.ne.s32.totalorder %s225, %s239
      %p241 = scmp.eq.s32.totalorder %s26, 0
      %p242 = por %p240, %p241
      %s244 = sadd.s32 %s243, 1
      %p247 = scmp.eq.s32.totalorder %s20, 1
      %p248 = scmp.ne.s32.totalorder %s243, %s245
      %p249 = scmp.eq.s32.totalorder %s20, 0
      %p250 = por %p248, %p249
      %p251 = scmp.ne.s32.totalorder %s243, %s245
      %p252 = scmp.eq.s32.totalorder %s25, 1
      %p253 = por %p251, %p252
      %p254 = scmp.ne.s32.totalorder %s245, %s246
      %p255 = scmp.eq.s32.totalorder %s25, 0
      %p256 = por %p254, %p255
      %p257 = scmp.ne.s32.totalorder %s245, %s246
      %p258 = scmp.eq.s32.totalorder %s26, 1
      %p259 = por %p257, %p258
      %p261 = scmp.ne.s32.totalorder %s246, %s260
      %p262 = scmp.eq.s32.totalorder %s26, 0
      %p263 = por %p261, %p262
      %s264 = ssub.s32 %s27, %s46
      %s265 = ssub.s32 %s28, %s42
      %s266 = sor.u32 %s264, %s265
      %p267 = scmp.eq.s32.totalorder %s266, 0
      %s269 = sadd.s32 %s268, 1
      %s270 = scalar_select %p267, %s268, %s269
      %p273 = pneg %p267
      %p274 = scmp.eq.s32.totalorder %s20, 1
      %p275 = por %p273, %p274
      %p276 = scmp.ne.s32.totalorder %s268, %s271
      %p277 = scmp.eq.s32.totalorder %s20, 0
      %p278 = por %p276, %p277
      %p279 = scmp.ne.s32.totalorder %s268, %s271
      %p280 = scmp.eq.s32.totalorder %s25, 1
      %p281 = por %p279, %p280
      %p282 = scmp.ne.s32.totalorder %s271, %s272
      %p283 = scmp.eq.s32.totalorder %s25, 0
      %p284 = por %p282, %p283
      %p285 = scmp.ne.s32.totalorder %s271, %s272
      %p286 = scmp.eq.s32.totalorder %s26, 1
      %p287 = por %p285, %p286
      %p289 = scmp.ne.s32.totalorder %s272, %s288
      %p290 = scmp.eq.s32.totalorder %s26, 0
      %p291 = por %p289, %p290
      %p292 = scmp.le.s32.totalorder 1, %s20
      %p293 = scmp.lt.s32.totalorder %s20, 3
      %p294 = pnand %p292, %p293
      %p295 = pneg %p294
      // Predicated region
      $region9: #{tpu_custom_call.1} parent=5 // pred_check
        _
      $region10: #{tpu_custom_call.1} parent=5 // pred_check_branch
        %297 = sbr.rel (%p294) target = $region12
      $region11: #{tpu_custom_call.1} parent=5 // pred_region
        %s298 = ssub.s32 %s20, 1
        // Predicated region
        $region13: #{tpu_custom_call.1} parent=11 // pred_check
          %p299 = pneg %p88
        $region14: #{tpu_custom_call.1} parent=11 // pred_check_branch
          %301 = sbr.rel (%p299) target = $region16
        $region15: #{tpu_custom_call.1} parent=11 // pred_region
          _
        $region16: #{tpu_custom_call.1} parent=11 // pred_fallthru
          _
        // Predicated region
        $region17: #{tpu_custom_call.1} parent=11 // pred_check
          %p302 = pneg %p109
        $region18: #{tpu_custom_call.1} parent=11 // pred_check_branch
          %304 = sbr.rel (%p302) target = $region20
        $region19: #{tpu_custom_call.1} parent=11 // pred_region
          _
        $region20: #{tpu_custom_call.1} parent=11 // pred_fallthru
          _
        // Predicated region
        $region21: #{tpu_custom_call.1} parent=11 // pred_check
          %p305 = pneg %p130
        $region22: #{tpu_custom_call.1} parent=11 // pred_check_branch
          %307 = sbr.rel (%p305) target = $region24
        $region23: #{tpu_custom_call.1} parent=11 // pred_region
          _
        $region24: #{tpu_custom_call.1} parent=11 // pred_fallthru
          _
        // Predicated region
        $region25: #{tpu_custom_call.1} parent=11 // pred_check
          %p308 = pneg %p151
        $region26: #{tpu_custom_call.1} parent=11 // pred_check_branch
          %310 = sbr.rel (%p308) target = $region28
        $region27: #{tpu_custom_call.1} parent=11 // pred_region
          _
        $region28: #{tpu_custom_call.1} parent=11 // pred_fallthru
          _
        // Predicated region
        $region29: #{tpu_custom_call.1} parent=11 // pred_check
          %p311 = pneg %p172
        $region30: #{tpu_custom_call.1} parent=11 // pred_check_branch
          %313 = sbr.rel (%p311) target = $region32
        $region31: #{tpu_custom_call.1} parent=11 // pred_region
          _
        $region32: #{tpu_custom_call.1} parent=11 // pred_fallthru
          _
        // Predicated region
        $region33: #{tpu_custom_call.1} parent=11 // pred_check
          %p314 = pneg %p193
        $region34: #{tpu_custom_call.1} parent=11 // pred_check_branch
          %316 = sbr.rel (%p314) target = $region36
        $region35: #{tpu_custom_call.1} parent=11 // pred_region
          _
        $region36: #{tpu_custom_call.1} parent=11 // pred_fallthru
          _
        // Predicated region
        $region37: #{tpu_custom_call.1} parent=11 // pred_check
          %p317 = pneg %p214
        $region38: #{tpu_custom_call.1} parent=11 // pred_check_branch
          %319 = sbr.rel (%p317) target = $region40
        $region39: #{tpu_custom_call.1} parent=11 // pred_region
          %s321 = ssub.s32 16384, 16384
          %322 = vsyncadd [#allocation3], %s321
          %s323 = sshll.u32 [#allocation2], 4
          %s324 = int_to_ptr.vmem [resolvable:$true] %s323
          %329 = dma.hbm_to_vmem [thread:$0]  %s7, 16384, %s324, [#allocation3], 1024, 1024, 64
        $region40: #{tpu_custom_call.1} parent=11 // pred_fallthru
          _
        // Predicated region
        $region41: #{tpu_custom_call.1} parent=11 // pred_check
          %p330 = pneg %p235
        $region42: #{tpu_custom_call.1} parent=11 // pred_check_branch
          %332 = sbr.rel (%p330) target = $region44
        $region43: #{tpu_custom_call.1} parent=11 // pred_region
          _
        $region44: #{tpu_custom_call.1} parent=11 // pred_fallthru
          _
        // Predicated region
        $region45: #{tpu_custom_call.1} parent=11 // pred_check
          %p333 = pneg %p256
        $region46: #{tpu_custom_call.1} parent=11 // pred_check_branch
          %335 = sbr.rel (%p333) target = $region48
        $region47: #{tpu_custom_call.1} parent=11 // pred_region
          _
        $region48: #{tpu_custom_call.1} parent=11 // pred_fallthru
          _
      $region12: #{tpu_custom_call.1} parent=5 // pred_fallthru
        _
      %p336 = scmp.lt.s32.totalorder %s20, 2
      // Predicated region
      $region49: #{tpu_custom_call.1} parent=5 // pred_check
        %p337 = pneg %p336
      $region50: #{tpu_custom_call.1} parent=5 // pred_check_branch
        %339 = sbr.rel (%p337) target = $region52
      $region51: #{tpu_custom_call.1} parent=5 // pred_region
        // Predicated region
        $region53: #{tpu_custom_call.1} parent=51 // pred_check
          %p340 = pneg %p61
        $region54: #{tpu_custom_call.1} parent=51 // pred_check_branch
          %342 = sbr.rel (%p340) target = $region56
        $region55: #{tpu_custom_call.1} parent=51 // pred_region
          %s343 = smul.u32 16, %s29
          %p344 = scmp.lt.s32.totalorder %s27, 1
          %s345 = scalar_select %p344, %s27, 1
          %p346 = scmp.lt.s32.totalorder %s343, 15
          %s347 = scalar_select %p346, %s343, 15
          %s348 = smul.addr %s345, 16
          %s349 = sadd.s32 %s347, %s348
          %s350 = smul.addr %s349, 8
          %s351 = scalar_lea.vmem %s0, %s350
          %s352 = smul.u32 16, %s29
        $region56: #{tpu_custom_call.1} parent=51 // pred_fallthru
          _
      $region52: #{tpu_custom_call.1} parent=5 // pred_fallthru
        _
      %p353 = scmp.le.s32.totalorder 1, %s20
      %p354 = scmp.lt.s32.totalorder %s20, 3
      %p355 = pnand %p353, %p354
      %p356 = pneg %p355
      // Predicated region
      $region57: #{tpu_custom_call.1} parent=5 // pred_check
        _
      $region58: #{tpu_custom_call.1} parent=5 // pred_check_branch
        %358 = sbr.rel (%p355) target = $region60
      $region59: #{tpu_custom_call.1} parent=5 // pred_region
        %s359 = ssub.s32 %s20, 1
        // Predicated region
        $region61: #{tpu_custom_call.1} parent=59 // pred_check
          %p360 = pneg %p214
        $region62: #{tpu_custom_call.1} parent=59 // pred_check_branch
          %362 = sbr.rel (%p360) target = $region64
        $region63: #{tpu_custom_call.1} parent=59 // pred_region
          %363 = dma.done [#allocation3], 16384
        $region64: #{tpu_custom_call.1} parent=59 // pred_fallthru
          _
        %s364 = smul.u32 16, %s32
        %p365 = scmp.lt.s32.totalorder %s30, 1
        %s366 = scalar_select %p365, %s30, 1
        %p367 = scmp.lt.s32.totalorder %s364, 15
        %s368 = scalar_select %p367, %s364, 15
        %s369 = smul.addr %s366, 16
        %s370 = sadd.s32 %s368, %s369
        %s371 = smul.addr %s370, 8
        %s372 = scalar_lea.vmem %s0, %s371
        %p373 = pneg %p67
        %p374 = pneg %p64
        %p375 = pneg %p88
        %p376 = pneg %p85
        %p377 = pneg %p109
        %p378 = pneg %p106
        %p379 = pneg %p130
        %p380 = pneg %p127
        %p381 = pneg %p151
        %p382 = pneg %p148
        %p383 = pneg %p172
        %p384 = pneg %p169
        %p385 = pneg %p193
        %p386 = pneg %p190
        %p387 = pneg %p214
        %p388 = pneg %p211
        %p389 = pneg %p235
        %p390 = pneg %p232
        %p391 = pneg %p256
        %p392 = pneg %p253
        %p393 = pneg %p284
        %p394 = pneg %p281
        %s395 = sand.u32 %s271, 1
        %s396 = scalar_lea.sflag [#allocation4], %s395
        %s397 = sand.u32 %s271, 1
        %s398 = smul.addr %s397, 8
        %s399 = scalar_lea.vmem [#allocation5], %s398
        %s400 = smul.u32 16, %s32
        %p401 = scmp.lt.s32.totalorder %s30, 1
        %s402 = scalar_select %p401, %s30, 1
        %p403 = scmp.lt.s32.totalorder %s400, 15
        %s404 = scalar_select %p403, %s400, 15
        %s405 = smul.addr %s402, 16
        %s406 = sadd.s32 %s404, %s405
        %s407 = smul.addr %s406, 8
        %s408 = scalar_lea.vmem %s0, %s407
        %s409 = smul.u32 16, %s32
        %s410 = smul.u32 8, %s31
        %v411 = vld [vmem:[%s408] sm:$0xff]
        %v412 = vld [vmem:[%s408 + $0x8] sm:$0xff]
        %v413 = vld [vmem:[%s408 + $0x10] sm:$0xff]
        %v414 = vld [vmem:[%s408 + $0x18] sm:$0xff]
        %v415 = vld [vmem:[%s408 + $0x20] sm:$0xff]
        %v416 = vld [vmem:[%s408 + $0x28] sm:$0xff]
        %v417 = vld [vmem:[%s408 + $0x30] sm:$0xff]
        %v418 = vld [vmem:[%s408 + $0x38] sm:$0xff]
        %v419 = vld [vmem:[%s408 + $0x40] sm:$0xff]
        %v420 = vld [vmem:[%s408 + $0x48] sm:$0xff]
        %v421 = vld [vmem:[%s408 + $0x50] sm:$0xff]
        %v422 = vld [vmem:[%s408 + $0x58] sm:$0xff]
        %v423 = vld [vmem:[%s408 + $0x60] sm:$0xff]
        %v424 = vld [vmem:[%s408 + $0x68] sm:$0xff]
        %v425 = vld [vmem:[%s408 + $0x70] sm:$0xff]
        %v426 = vld [vmem:[%s408 + $0x78] sm:$0xff]
        %v427 = vld [vmem:[%s1] sm:$0xff]
        %vm428 = vcmask 64512
        %v430 = vsel %vm428, %v411, 0
        %v433 = vsel %vm428, %v412, 0
        %v436 = vsel %vm428, %v413, 0
        %v439 = vsel %vm428, %v414, 0
        %v442 = vsel %vm428, %v415, 0
        %v445 = vsel %vm428, %v416, 0
        %v448 = vsel %vm428, %v417, 0
        %v451 = vsel %vm428, %v418, 0
        %v454 = vsel %vm428, %v419, 0
        %v457 = vsel %vm428, %v420, 0
        %v460 = vsel %vm428, %v421, 0
        %v463 = vsel %vm428, %v422, 0
        %v466 = vsel %vm428, %v423, 0
        %v469 = vsel %vm428, %v424, 0
        %v472 = vsel %vm428, %v425, 0
        %v475 = vsel %vm428, %v426, 0
        %477 = vmatprep.subr.mxu0 0.0
        %478 = vmatpush1.msra.mxu0 0.0
        %479 = vmatprep.subr.mxu0 0.0
        %480 = vmatpush1.msra.mxu0 0.0
        %481 = vmatprep.subr.mxu0 0.0
        %482 = vmatpush1.msra.mxu0 0.0
        %483 = vmatprep.subr.mxu0 0.0
        %484 = vmatpush1.msra.mxu0 0.0
        %485 = vmatprep.subr.mxu0 0.0
        %486 = vmatpush1.msra.mxu0 0.0
        %487 = vmatprep.subr.mxu0 0.0
        %488 = vmatpush1.msra.mxu0 0.0
        %489 = vmatprep.subr.mxu0 0.0
        %490 = vmatpush1.msra.mxu0 0.0
        %491 = vmatprep.subr.mxu0 0.0
        %492 = vmatpush1.msra.mxu0 0.0
        %493 = vmatprep.subr.mxu0 0.0
        %494 = vmatpush1.msra.mxu0 0.0
        %495 = vmatprep.subr.mxu0 0.0
        %496 = vmatpush1.msra.mxu0 0.0
        %497 = vmatprep.subr.mxu0 0.0
        %498 = vmatpush1.msra.mxu0 0.0
        %499 = vmatprep.subr.mxu0 0.0
        %500 = vmatpush1.msra.mxu0 0.0
        %501 = vmatprep.subr.mxu0 0.0
        %502 = vmatpush1.msra.mxu0 0.0
        %503 = vmatprep.subr.mxu0 0.0
        %504 = vmatpush1.msra.mxu0 0.0
        %505 = vmatprep.subr.mxu0 0.0
        %506 = vmatpush1.msra.mxu0 0.0
        %507 = vmatprep.subr.mxu0 0.0
        %508 = vmatpush1.msra.mxu0 %v427
        %509 = vmatprep.subr.mxu0 0.0
        %510 = vmatpush2.msra.mxu0 0.0
        %511 = vmatprep.subr.mxu0 0.0
        %512 = vmatpush2.msra.mxu0 0.0
        %513 = vmatprep.subr.mxu0 0.0
        %514 = vmatpush2.msra.mxu0 0.0
        %515 = vmatprep.subr.mxu0 0.0
        %516 = vmatpush2.msra.mxu0 0.0
        %517 = vmatprep.subr.mxu0 0.0
        %518 = vmatpush2.msra.mxu0 0.0
        %519 = vmatprep.subr.mxu0 0.0
        %520 = vmatpush2.msra.mxu0 0.0
        %521 = vmatprep.subr.mxu0 0.0
        %522 = vmatpush2.msra.mxu0 0.0
        %523 = vmatprep.subr.mxu0 0.0
        %524 = vmatpush2.msra.mxu0 0.0
        %525 = vmatprep.subr.mxu0 0.0
        %526 = vmatpush2.msra.mxu0 0.0
        %527 = vmatprep.subr.mxu0 0.0
        %528 = vmatpush2.msra.mxu0 0.0
        %529 = vmatprep.subr.mxu0 0.0
        %530 = vmatpush2.msra.mxu0 0.0
        %531 = vmatprep.subr.mxu0 0.0
        %532 = vmatpush2.msra.mxu0 0.0
        %533 = vmatprep.subr.mxu0 0.0
        %534 = vmatpush2.msra.mxu0 0.0
        %535 = vmatprep.subr.mxu0 0.0
        %536 = vmatpush2.msra.mxu0 0.0
        %537 = vmatprep.subr.mxu0 0.0
        %538 = vmatpush2.msra.mxu0 0.0
        %539 = vmatprep.subr.mxu0 0.0
        %540 = vmatpush2.msra.mxu0 0.0
        %541 = vmatprep.mubr.f32.mxu0 0.0
        %542 = vmatmul.mubr.f32.gmra.mxu0 %v430
        %v543 = vpop.f32.mrf.mxu0
        %v544 = vadd.f32 0.0, %v543
        %v545 = vpop.f32.mrf.mxu0
        %546 = vmatprep.mubr.f32.mxu0 0.0
        %547 = vmatmul.mubr.f32.gmra.mxu0 %v433
        %v548 = vpop.f32.mrf.mxu0
        %v549 = vadd.f32 0.0, %v548
        %v550 = vpop.f32.mrf.mxu0
        %551 = vmatprep.mubr.f32.mxu0 0.0
        %552 = vmatmul.mubr.f32.gmra.mxu0 %v436
        %v553 = vpop.f32.mrf.mxu0
        %v554 = vadd.f32 0.0, %v553
        %v555 = vpop.f32.mrf.mxu0
        %556 = vmatprep.mubr.f32.mxu0 0.0
        %557 = vmatmul.mubr.f32.gmra.mxu0 %v439
        %v558 = vpop.f32.mrf.mxu0
        %v559 = vadd.f32 0.0, %v558
        %v560 = vpop.f32.mrf.mxu0
        %561 = vmatprep.mubr.f32.mxu0 0.0
        %562 = vmatmul.mubr.f32.gmra.mxu0 %v442
        %v563 = vpop.f32.mrf.mxu0
        %v564 = vadd.f32 0.0, %v563
        %v565 = vpop.f32.mrf.mxu0
        %566 = vmatprep.mubr.f32.mxu0 0.0
        %567 = vmatmul.mubr.f32.gmra.mxu0 %v445
        %v568 = vpop.f32.mrf.mxu0
        %v569 = vadd.f32 0.0, %v568
        %v570 = vpop.f32.mrf.mxu0
        %571 = vmatprep.mubr.f32.mxu0 0.0
        %572 = vmatmul.mubr.f32.gmra.mxu0 %v448
        %v573 = vpop.f32.mrf.mxu0
        %v574 = vadd.f32 0.0, %v573
        %v575 = vpop.f32.mrf.mxu0
        %576 = vmatprep.mubr.f32.mxu0 0.0
        %577 = vmatmul.mubr.f32.gmra.mxu0 %v451
        %v578 = vpop.f32.mrf.mxu0
        %v579 = vadd.f32 0.0, %v578
        %v580 = vpop.f32.mrf.mxu0
        %581 = vmatprep.mubr.f32.mxu0 0.0
        %582 = vmatmul.mubr.f32.gmra.mxu0 %v454
        %v583 = vpop.f32.mrf.mxu0
        %v584 = vadd.f32 0.0, %v583
        %v585 = vpop.f32.mrf.mxu0
        %586 = vmatprep.mubr.f32.mxu0 0.0
        %587 = vmatmul.mubr.f32.gmra.mxu0 %v457
        %v588 = vpop.f32.mrf.mxu0
        %v589 = vadd.f32 0.0, %v588
        %v590 = vpop.f32.mrf.mxu0
        %591 = vmatprep.mubr.f32.mxu0 0.0
        %592 = vmatmul.mubr.f32.gmra.mxu0 %v460
        %v593 = vpop.f32.mrf.mxu0
        %v594 = vadd.f32 0.0, %v593
        %v595 = vpop.f32.mrf.mxu0
        %596 = vmatprep.mubr.f32.mxu0 0.0
        %597 = vmatmul.mubr.f32.gmra.mxu0 %v463
        %v598 = vpop.f32.mrf.mxu0
        %v599 = vadd.f32 0.0, %v598
        %v600 = vpop.f32.mrf.mxu0
        %601 = vmatprep.mubr.f32.mxu0 0.0
        %602 = vmatmul.mubr.f32.gmra.mxu0 %v466
        %v603 = vpop.f32.mrf.mxu0
        %v604 = vadd.f32 0.0, %v603
        %v605 = vpop.f32.mrf.mxu0
        %606 = vmatprep.mubr.f32.mxu0 0.0
        %607 = vmatmul.mubr.f32.gmra.mxu0 %v469
        %v608 = vpop.f32.mrf.mxu0
        %v609 = vadd.f32 0.0, %v608
        %v610 = vpop.f32.mrf.mxu0
        %611 = vmatprep.mubr.f32.mxu0 0.0
        %612 = vmatmul.mubr.f32.gmra.mxu0 %v472
        %v613 = vpop.f32.mrf.mxu0
        %v614 = vadd.f32 0.0, %v613
        %v615 = vpop.f32.mrf.mxu0
        %616 = vmatprep.mubr.f32.mxu0 0.0
        %617 = vmatmul.mubr.f32.gmra.mxu0 %v475
        %v618 = vpop.f32.mrf.mxu0
        %v619 = vadd.f32 0.0, %v618
        %v620 = vpop.f32.mrf.mxu0
        %621 = vdwg.mxu0
        %v622 = vld [vmem:[%s2] sm:$0x1]
        %v624 = vlaneseq
        %v625 = vshrl.u32 %v624, 7
        %v626 = vsub.s32 0, %v625
        %v627 = vrot.slane %v622, %v626
        %v629 = vmul.f32 %v544, %v627
        %v630 = vmul.f32 %v549, %v627
        %v631 = vmul.f32 %v554, %v627
        %v632 = vmul.f32 %v559, %v627
        %v633 = vmul.f32 %v564, %v627
        %v634 = vmul.f32 %v569, %v627
        %v635 = vmul.f32 %v574, %v627
        %v636 = vmul.f32 %v579, %v627
        %v637 = vmul.f32 %v584, %v627
        %v638 = vmul.f32 %v589, %v627
        %v639 = vmul.f32 %v594, %v627
        %v640 = vmul.f32 %v599, %v627
        %v641 = vmul.f32 %v604, %v627
        %v642 = vmul.f32 %v609, %v627
        %v643 = vmul.f32 %v614, %v627
        %v644 = vmul.f32 %v619, %v627
        %v645 = vld [vmem:[%s3] sm:$0x1]
        %v647 = vlaneseq
        %v648 = vshrl.u32 %v647, 7
        %v649 = vsub.s32 0, %v648
        %v650 = vrot.slane %v645, %v649
        %v652 = vadd.f32 %v629, %v650
        %v653 = vadd.f32 %v630, %v650
        %v654 = vadd.f32 %v631, %v650
        %v655 = vadd.f32 %v632, %v650
        %v656 = vadd.f32 %v633, %v650
        %v657 = vadd.f32 %v634, %v650
        %v658 = vadd.f32 %v635, %v650
        %v659 = vadd.f32 %v636, %v650
        %v660 = vadd.f32 %v637, %v650
        %v661 = vadd.f32 %v638, %v650
        %v662 = vadd.f32 %v639, %v650
        %v663 = vadd.f32 %v640, %v650
        %v664 = vadd.f32 %v641, %v650
        %v665 = vadd.f32 %v642, %v650
        %v666 = vadd.f32 %v643, %v650
        %v667 = vadd.f32 %v644, %v650
        %v668 = vmax.f32 %v652, 0.0
        %v669 = vmax.f32 %v653, 0.0
        %v670 = vmax.f32 %v654, 0.0
        %v671 = vmax.f32 %v655, 0.0
        %v672 = vmax.f32 %v656, 0.0
        %v673 = vmax.f32 %v657, 0.0
        %v674 = vmax.f32 %v658, 0.0
        %v675 = vmax.f32 %v659, 0.0
        %v676 = vmax.f32 %v660, 0.0
        %v677 = vmax.f32 %v661, 0.0
        %v678 = vmax.f32 %v662, 0.0
        %v679 = vmax.f32 %v663, 0.0
        %v680 = vmax.f32 %v664, 0.0
        %v681 = vmax.f32 %v665, 0.0
        %v682 = vmax.f32 %v666, 0.0
        %v683 = vmax.f32 %v667, 0.0
        %v684 = vld [vmem:[%s4] sm:$0xff]
        %v685 = vld [vmem:[%s4 + $0x8] sm:$0xff]
        %v686 = vld [vmem:[%s4 + $0x10] sm:$0xff]
        %v687 = vld [vmem:[%s4 + $0x18] sm:$0xff]
        %v688 = vld [vmem:[%s4 + $0x20] sm:$0xff]
        %v689 = vld [vmem:[%s4 + $0x28] sm:$0xff]
        %v690 = vld [vmem:[%s4 + $0x30] sm:$0xff]
        %v691 = vld [vmem:[%s4 + $0x38] sm:$0xff]
        %vm692 = vcmask 523264
        %v694 = vsel %vm692, %v668, 0
        %v697 = vsel %vm692, %v669, 0
        %v700 = vsel %vm692, %v670, 0
        %v703 = vsel %vm692, %v671, 0
        %v706 = vsel %vm692, %v672, 0
        %v709 = vsel %vm692, %v673, 0
        %v712 = vsel %vm692, %v674, 0
        %v715 = vsel %vm692, %v675, 0
        %v718 = vsel %vm692, %v676, 0
        %v721 = vsel %vm692, %v677, 0
        %v724 = vsel %vm692, %v678, 0
        %v727 = vsel %vm692, %v679, 0
        %v730 = vsel %vm692, %v680, 0
        %v733 = vsel %vm692, %v681, 0
        %v736 = vsel %vm692, %v682, 0
        %v739 = vsel %vm692, %v683, 0
        %741 = vmatprep.subr.mxu0 0.0
        %742 = vmatpush1.msra.mxu0 0.0
        %743 = vmatprep.subr.mxu0 0.0
        %744 = vmatpush1.msra.mxu0 0.0
        %745 = vmatprep.subr.mxu0 0.0
        %746 = vmatpush1.msra.mxu0 0.0
        %747 = vmatprep.subr.mxu0 0.0
        %748 = vmatpush1.msra.mxu0 0.0
        %749 = vmatprep.subr.mxu0 0.0
        %750 = vmatpush1.msra.mxu0 0.0
        %751 = vmatprep.subr.mxu0 0.0
        %752 = vmatpush1.msra.mxu0 0.0
        %753 = vmatprep.subr.mxu0 0.0
        %754 = vmatpush1.msra.mxu0 0.0
        %755 = vmatprep.subr.mxu0 0.0
        %756 = vmatpush1.msra.mxu0 0.0
        %757 = vmatprep.subr.mxu0 0.0
        %758 = vmatpush1.msra.mxu0 %v691
        %759 = vmatprep.subr.mxu0 0.0
        %760 = vmatpush1.msra.mxu0 %v690
        %761 = vmatprep.subr.mxu0 0.0
        %762 = vmatpush1.msra.mxu0 %v689
        %763 = vmatprep.subr.mxu0 0.0
        %764 = vmatpush1.msra.mxu0 %v688
        %765 = vmatprep.subr.mxu0 0.0
        %766 = vmatpush1.msra.mxu0 %v687
        %767 = vmatprep.subr.mxu0 0.0
        %768 = vmatpush1.msra.mxu0 %v686
        %769 = vmatprep.subr.mxu0 0.0
        %770 = vmatpush1.msra.mxu0 %v685
        %771 = vmatprep.subr.mxu0 0.0
        %772 = vmatpush1.msra.mxu0 %v684
        %773 = vmatprep.subr.mxu0 0.0
        %774 = vmatpush2.msra.mxu0 0.0
        %775 = vmatprep.subr.mxu0 0.0
        %776 = vmatpush2.msra.mxu0 0.0
        %777 = vmatprep.subr.mxu0 0.0
        %778 = vmatpush2.msra.mxu0 0.0
        %779 = vmatprep.subr.mxu0 0.0
        %780 = vmatpush2.msra.mxu0 0.0
        %781 = vmatprep.subr.mxu0 0.0
        %782 = vmatpush2.msra.mxu0 0.0
        %783 = vmatprep.subr.mxu0 0.0
        %784 = vmatpush2.msra.mxu0 0.0
        %785 = vmatprep.subr.mxu0 0.0
        %786 = vmatpush2.msra.mxu0 0.0
        %787 = vmatprep.subr.mxu0 0.0
        %788 = vmatpush2.msra.mxu0 0.0
        %789 = vmatprep.subr.mxu0 0.0
        %790 = vmatpush2.msra.mxu0 0.0
        %791 = vmatprep.subr.mxu0 0.0
        %792 = vmatpush2.msra.mxu0 0.0
        %793 = vmatprep.subr.mxu0 0.0
        %794 = vmatpush2.msra.mxu0 0.0
        %795 = vmatprep.subr.mxu0 0.0
        %796 = vmatpush2.msra.mxu0 0.0
        %797 = vmatprep.subr.mxu0 0.0
        %798 = vmatpush2.msra.mxu0 0.0
        %799 = vmatprep.subr.mxu0 0.0
        %800 = vmatpush2.msra.mxu0 0.0
        %801 = vmatprep.subr.mxu0 0.0
        %802 = vmatpush2.msra.mxu0 0.0
        %803 = vmatprep.subr.mxu0 0.0
        %804 = vmatpush2.msra.mxu0 0.0
        %805 = vmatprep.mubr.f32.mxu0 0.0
        %806 = vmatmul.mubr.f32.gmra.mxu0 %v694
        %v807 = vpop.f32.mrf.mxu0
        %v808 = vadd.f32 0.0, %v807
        %v809 = vpop.f32.mrf.mxu0
        %810 = vmatprep.mubr.f32.mxu0 0.0
        %811 = vmatmul.mubr.f32.gmra.mxu0 %v697
        %v812 = vpop.f32.mrf.mxu0
        %v813 = vadd.f32 0.0, %v812
        %v814 = vpop.f32.mrf.mxu0
        %815 = vmatprep.mubr.f32.mxu0 0.0
        %816 = vmatmul.mubr.f32.gmra.mxu0 %v700
        %v817 = vpop.f32.mrf.mxu0
        %v818 = vadd.f32 0.0, %v817
        %v819 = vpop.f32.mrf.mxu0
        %820 = vmatprep.mubr.f32.mxu0 0.0
        %821 = vmatmul.mubr.f32.gmra.mxu0 %v703
        %v822 = vpop.f32.mrf.mxu0
        %v823 = vadd.f32 0.0, %v822
        %v824 = vpop.f32.mrf.mxu0
        %825 = vmatprep.mubr.f32.mxu0 0.0
        %826 = vmatmul.mubr.f32.gmra.mxu0 %v706
        %v827 = vpop.f32.mrf.mxu0
        %v828 = vadd.f32 0.0, %v827
        %v829 = vpop.f32.mrf.mxu0
        %830 = vmatprep.mubr.f32.mxu0 0.0
        %831 = vmatmul.mubr.f32.gmra.mxu0 %v709
        %v832 = vpop.f32.mrf.mxu0
        %v833 = vadd.f32 0.0, %v832
        %v834 = vpop.f32.mrf.mxu0
        %835 = vmatprep.mubr.f32.mxu0 0.0
        %836 = vmatmul.mubr.f32.gmra.mxu0 %v712
        %v837 = vpop.f32.mrf.mxu0
        %v838 = vadd.f32 0.0, %v837
        %v839 = vpop.f32.mrf.mxu0
        %840 = vmatprep.mubr.f32.mxu0 0.0
        %841 = vmatmul.mubr.f32.gmra.mxu0 %v715
        %v842 = vpop.f32.mrf.mxu0
        %v843 = vadd.f32 0.0, %v842
        %v844 = vpop.f32.mrf.mxu0
        %845 = vmatprep.mubr.f32.mxu0 0.0
        %846 = vmatmul.mubr.f32.gmra.mxu0 %v718
        %v847 = vpop.f32.mrf.mxu0
        %v848 = vadd.f32 0.0, %v847
        %v849 = vpop.f32.mrf.mxu0
        %850 = vmatprep.mubr.f32.mxu0 0.0
        %851 = vmatmul.mubr.f32.gmra.mxu0 %v721
        %v852 = vpop.f32.mrf.mxu0
        %v853 = vadd.f32 0.0, %v852
        %v854 = vpop.f32.mrf.mxu0
        %855 = vmatprep.mubr.f32.mxu0 0.0
        %856 = vmatmul.mubr.f32.gmra.mxu0 %v724
        %v857 = vpop.f32.mrf.mxu0
        %v858 = vadd.f32 0.0, %v857
        %v859 = vpop.f32.mrf.mxu0
        %860 = vmatprep.mubr.f32.mxu0 0.0
        %861 = vmatmul.mubr.f32.gmra.mxu0 %v727
        %v862 = vpop.f32.mrf.mxu0
        %v863 = vadd.f32 0.0, %v862
        %v864 = vpop.f32.mrf.mxu0
        %865 = vmatprep.mubr.f32.mxu0 0.0
        %866 = vmatmul.mubr.f32.gmra.mxu0 %v730
        %v867 = vpop.f32.mrf.mxu0
        %v868 = vadd.f32 0.0, %v867
        %v869 = vpop.f32.mrf.mxu0
        %870 = vmatprep.mubr.f32.mxu0 0.0
        %871 = vmatmul.mubr.f32.gmra.mxu0 %v733
        %v872 = vpop.f32.mrf.mxu0
        %v873 = vadd.f32 0.0, %v872
        %v874 = vpop.f32.mrf.mxu0
        %875 = vmatprep.mubr.f32.mxu0 0.0
        %876 = vmatmul.mubr.f32.gmra.mxu0 %v736
        %v877 = vpop.f32.mrf.mxu0
        %v878 = vadd.f32 0.0, %v877
        %v879 = vpop.f32.mrf.mxu0
        %880 = vmatprep.mubr.f32.mxu0 0.0
        %881 = vmatmul.mubr.f32.gmra.mxu0 %v739
        %v882 = vpop.f32.mrf.mxu0
        %v883 = vadd.f32 0.0, %v882
        %v884 = vpop.f32.mrf.mxu0
        %885 = vdwg.mxu0
        %v886 = vld [vmem:[%s5] sm:$0x1]
        %v888 = vlaneseq
        %v889 = vshrl.u32 %v888, 7
        %v890 = vsub.s32 0, %v889
        %v891 = vrot.slane %v886, %v890
        %v893 = vmul.f32 %v808, %v891
        %v894 = vmul.f32 %v813, %v891
        %v895 = vmul.f32 %v818, %v891
        %v896 = vmul.f32 %v823, %v891
        %v897 = vmul.f32 %v828, %v891
        %v898 = vmul.f32 %v833, %v891
        %v899 = vmul.f32 %v838, %v891
        %v900 = vmul.f32 %v843, %v891
        %v901 = vmul.f32 %v848, %v891
        %v902 = vmul.f32 %v853, %v891
        %v903 = vmul.f32 %v858, %v891
        %v904 = vmul.f32 %v863, %v891
        %v905 = vmul.f32 %v868, %v891
        %v906 = vmul.f32 %v873, %v891
        %v907 = vmul.f32 %v878, %v891
        %v908 = vmul.f32 %v883, %v891
        %v909 = vld [vmem:[%s6] sm:$0x1]
        %v911 = vlaneseq
        %v912 = vshrl.u32 %v911, 7
        %v913 = vsub.s32 0, %v912
        %v914 = vrot.slane %v909, %v913
        %v916 = vadd.f32 %v893, %v914
        %v917 = vadd.f32 %v894, %v914
        %v918 = vadd.f32 %v895, %v914
        %v919 = vadd.f32 %v896, %v914
        %v920 = vadd.f32 %v897, %v914
        %v921 = vadd.f32 %v898, %v914
        %v922 = vadd.f32 %v899, %v914
        %v923 = vadd.f32 %v900, %v914
        %v924 = vadd.f32 %v901, %v914
        %v925 = vadd.f32 %v902, %v914
        %v926 = vadd.f32 %v903, %v914
        %v927 = vadd.f32 %v904, %v914
        %v928 = vadd.f32 %v905, %v914
        %v929 = vadd.f32 %v906, %v914
        %v930 = vadd.f32 %v907, %v914
        %v931 = vadd.f32 %v908, %v914
        %v932 = vmax.f32 %v916, 0.0
        %v933 = vmax.f32 %v917, 0.0
        %v934 = vmax.f32 %v918, 0.0
        %v935 = vmax.f32 %v919, 0.0
        %v936 = vmax.f32 %v920, 0.0
        %v937 = vmax.f32 %v921, 0.0
        %v938 = vmax.f32 %v922, 0.0
        %v939 = vmax.f32 %v923, 0.0
        %v940 = vmax.f32 %v924, 0.0
        %v941 = vmax.f32 %v925, 0.0
        %v942 = vmax.f32 %v926, 0.0
        %v943 = vmax.f32 %v927, 0.0
        %v944 = vmax.f32 %v928, 0.0
        %v945 = vmax.f32 %v929, 0.0
        %v946 = vmax.f32 %v930, 0.0
        %v947 = vmax.f32 %v931, 0.0
        %v948 = vld [vmem:[#allocation2] sm:$0xff]
        %v949 = vld [vmem:[#allocation2 + $0x8] sm:$0xff]
        %v950 = vld [vmem:[#allocation2 + $0x10] sm:$0xff]
        %v951 = vld [vmem:[#allocation2 + $0x18] sm:$0xff]
        %v952 = vld [vmem:[#allocation2 + $0x20] sm:$0xff]
        %v953 = vld [vmem:[#allocation2 + $0x28] sm:$0xff]
        %v954 = vld [vmem:[#allocation2 + $0x30] sm:$0xff]
        %v955 = vld [vmem:[#allocation2 + $0x38] sm:$0xff]
        %v956 = vld [vmem:[#allocation2 + $0x40] sm:$0xff]
        %v957 = vld [vmem:[#allocation2 + $0x48] sm:$0xff]
        %v958 = vld [vmem:[#allocation2 + $0x50] sm:$0xff]
        %v959 = vld [vmem:[#allocation2 + $0x58] sm:$0xff]
        %v960 = vld [vmem:[#allocation2 + $0x60] sm:$0xff]
        %v961 = vld [vmem:[#allocation2 + $0x68] sm:$0xff]
        %v962 = vld [vmem:[#allocation2 + $0x70] sm:$0xff]
        %v963 = vld [vmem:[#allocation2 + $0x78] sm:$0xff]
        %v964 = vld [vmem:[#allocation2 + $0x80] sm:$0xff]
        %v965 = vld [vmem:[#allocation2 + $0x88] sm:$0xff]
        %v966 = vld [vmem:[#allocation2 + $0x90] sm:$0xff]
        %v967 = vld [vmem:[#allocation2 + $0x98] sm:$0xff]
        %v968 = vld [vmem:[#allocation2 + $0xa0] sm:$0xff]
        %v969 = vld [vmem:[#allocation2 + $0xa8] sm:$0xff]
        %v970 = vld [vmem:[#allocation2 + $0xb0] sm:$0xff]
        %v971 = vld [vmem:[#allocation2 + $0xb8] sm:$0xff]
        %v972 = vld [vmem:[#allocation2 + $0xc0] sm:$0xff]
        %v973 = vld [vmem:[#allocation2 + $0xc8] sm:$0xff]
        %v974 = vld [vmem:[#allocation2 + $0xd0] sm:$0xff]
        %v975 = vld [vmem:[#allocation2 + $0xd8] sm:$0xff]
        %v976 = vld [vmem:[#allocation2 + $0xe0] sm:$0xff]
        %v977 = vld [vmem:[#allocation2 + $0xe8] sm:$0xff]
        %v978 = vld [vmem:[#allocation2 + $0xf0] sm:$0xff]
        %v979 = vld [vmem:[#allocation2 + $0xf8] sm:$0xff]
        %v980 = vld [vmem:[#allocation2 + $0x100] sm:$0xff]
        %v981 = vld [vmem:[#allocation2 + $0x108] sm:$0xff]
        %v982 = vld [vmem:[#allocation2 + $0x110] sm:$0xff]
        %v983 = vld [vmem:[#allocation2 + $0x118] sm:$0xff]
        %v984 = vld [vmem:[#allocation2 + $0x120] sm:$0xff]
        %v985 = vld [vmem:[#allocation2 + $0x128] sm:$0xff]
        %v986 = vld [vmem:[#allocation2 + $0x130] sm:$0xff]
        %v987 = vld [vmem:[#allocation2 + $0x138] sm:$0xff]
        %v988 = vld [vmem:[#allocation2 + $0x140] sm:$0xff]
        %v989 = vld [vmem:[#allocation2 + $0x148] sm:$0xff]
        %v990 = vld [vmem:[#allocation2 + $0x150] sm:$0xff]
        %v991 = vld [vmem:[#allocation2 + $0x158] sm:$0xff]
        %v992 = vld [vmem:[#allocation2 + $0x160] sm:$0xff]
        %v993 = vld [vmem:[#allocation2 + $0x168] sm:$0xff]
        %v994 = vld [vmem:[#allocation2 + $0x170] sm:$0xff]
        %v995 = vld [vmem:[#allocation2 + $0x178] sm:$0xff]
        %v996 = vld [vmem:[#allocation2 + $0x180] sm:$0xff]
        %v997 = vld [vmem:[#allocation2 + $0x188] sm:$0xff]
        %v998 = vld [vmem:[#allocation2 + $0x190] sm:$0xff]
        %v999 = vld [vmem:[#allocation2 + $0x198] sm:$0xff]
        %v1000 = vld [vmem:[#allocation2 + $0x1a0] sm:$0xff]
        %v1001 = vld [vmem:[#allocation2 + $0x1a8] sm:$0xff]
        %v1002 = vld [vmem:[#allocation2 + $0x1b0] sm:$0xff]
        %v1003 = vld [vmem:[#allocation2 + $0x1b8] sm:$0xff]
        %v1004 = vld [vmem:[#allocation2 + $0x1c0] sm:$0xff]
        %v1005 = vld [vmem:[#allocation2 + $0x1c8] sm:$0xff]
        %v1006 = vld [vmem:[#allocation2 + $0x1d0] sm:$0xff]
        %v1007 = vld [vmem:[#allocation2 + $0x1d8] sm:$0xff]
        %v1008 = vld [vmem:[#allocation2 + $0x1e0] sm:$0xff]
        %v1009 = vld [vmem:[#allocation2 + $0x1e8] sm:$0xff]
        %v1010 = vld [vmem:[#allocation2 + $0x1f0] sm:$0xff]
        %v1011 = vld [vmem:[#allocation2 + $0x1f8] sm:$0xff]
        %v1012 = vld [vmem:[#allocation2 + $0x200] sm:$0xff]
        %v1013 = vld [vmem:[#allocation2 + $0x208] sm:$0xff]
        %v1014 = vld [vmem:[#allocation2 + $0x210] sm:$0xff]
        %v1015 = vld [vmem:[#allocation2 + $0x218] sm:$0xff]
        %v1016 = vld [vmem:[#allocation2 + $0x220] sm:$0xff]
        %v1017 = vld [vmem:[#allocation2 + $0x228] sm:$0xff]
        %v1018 = vld [vmem:[#allocation2 + $0x230] sm:$0xff]
        %v1019 = vld [vmem:[#allocation2 + $0x238] sm:$0xff]
        %v1020 = vld [vmem:[#allocation2 + $0x240] sm:$0xff]
        %v1021 = vld [vmem:[#allocation2 + $0x248] sm:$0xff]
        %v1022 = vld [vmem:[#allocation2 + $0x250] sm:$0xff]
        %v1023 = vld [vmem:[#allocation2 + $0x258] sm:$0xff]
        %v1024 = vld [vmem:[#allocation2 + $0x260] sm:$0xff]
        %v1025 = vld [vmem:[#allocation2 + $0x268] sm:$0xff]
        %v1026 = vld [vmem:[#allocation2 + $0x270] sm:$0xff]
        %v1027 = vld [vmem:[#allocation2 + $0x278] sm:$0xff]
        %v1028 = vld [vmem:[#allocation2 + $0x280] sm:$0xff]
        %v1029 = vld [vmem:[#allocation2 + $0x288] sm:$0xff]
        %v1030 = vld [vmem:[#allocation2 + $0x290] sm:$0xff]
        %v1031 = vld [vmem:[#allocation2 + $0x298] sm:$0xff]
        %v1032 = vld [vmem:[#allocation2 + $0x2a0] sm:$0xff]
        %v1033 = vld [vmem:[#allocation2 + $0x2a8] sm:$0xff]
        %v1034 = vld [vmem:[#allocation2 + $0x2b0] sm:$0xff]
        %v1035 = vld [vmem:[#allocation2 + $0x2b8] sm:$0xff]
        %v1036 = vld [vmem:[#allocation2 + $0x2c0] sm:$0xff]
        %v1037 = vld [vmem:[#allocation2 + $0x2c8] sm:$0xff]
        %v1038 = vld [vmem:[#allocation2 + $0x2d0] sm:$0xff]
        %v1039 = vld [vmem:[#allocation2 + $0x2d8] sm:$0xff]
        %v1040 = vld [vmem:[#allocation2 + $0x2e0] sm:$0xff]
        %v1041 = vld [vmem:[#allocation2 + $0x2e8] sm:$0xff]
        %v1042 = vld [vmem:[#allocation2 + $0x2f0] sm:$0xff]
        %v1043 = vld [vmem:[#allocation2 + $0x2f8] sm:$0xff]
        %v1044 = vld [vmem:[#allocation2 + $0x300] sm:$0xff]
        %v1045 = vld [vmem:[#allocation2 + $0x308] sm:$0xff]
        %v1046 = vld [vmem:[#allocation2 + $0x310] sm:$0xff]
        %v1047 = vld [vmem:[#allocation2 + $0x318] sm:$0xff]
        %v1048 = vld [vmem:[#allocation2 + $0x320] sm:$0xff]
        %v1049 = vld [vmem:[#allocation2 + $0x328] sm:$0xff]
        %v1050 = vld [vmem:[#allocation2 + $0x330] sm:$0xff]
        %v1051 = vld [vmem:[#allocation2 + $0x338] sm:$0xff]
        %v1052 = vld [vmem:[#allocation2 + $0x340] sm:$0xff]
        %v1053 = vld [vmem:[#allocation2 + $0x348] sm:$0xff]
        %v1054 = vld [vmem:[#allocation2 + $0x350] sm:$0xff]
        %v1055 = vld [vmem:[#allocation2 + $0x358] sm:$0xff]
        %v1056 = vld [vmem:[#allocation2 + $0x360] sm:$0xff]
        %v1057 = vld [vmem:[#allocation2 + $0x368] sm:$0xff]
        %v1058 = vld [vmem:[#allocation2 + $0x370] sm:$0xff]
        %v1059 = vld [vmem:[#allocation2 + $0x378] sm:$0xff]
        %v1060 = vld [vmem:[#allocation2 + $0x380] sm:$0xff]
        %v1061 = vld [vmem:[#allocation2 + $0x388] sm:$0xff]
        %v1062 = vld [vmem:[#allocation2 + $0x390] sm:$0xff]
        %v1063 = vld [vmem:[#allocation2 + $0x398] sm:$0xff]
        %v1064 = vld [vmem:[#allocation2 + $0x3a0] sm:$0xff]
        %v1065 = vld [vmem:[#allocation2 + $0x3a8] sm:$0xff]
        %v1066 = vld [vmem:[#allocation2 + $0x3b0] sm:$0xff]
        %v1067 = vld [vmem:[#allocation2 + $0x3b8] sm:$0xff]
        %v1068 = vld [vmem:[#allocation2 + $0x3c0] sm:$0xff]
        %v1069 = vld [vmem:[#allocation2 + $0x3c8] sm:$0xff]
        %v1070 = vld [vmem:[#allocation2 + $0x3d0] sm:$0xff]
        %v1071 = vld [vmem:[#allocation2 + $0x3d8] sm:$0xff]
        %v1072 = vld [vmem:[#allocation2 + $0x3e0] sm:$0xff]
        %v1073 = vld [vmem:[#allocation2 + $0x3e8] sm:$0xff]
        %v1074 = vld [vmem:[#allocation2 + $0x3f0] sm:$0xff]
        %v1075 = vld [vmem:[#allocation2 + $0x3f8] sm:$0xff]
        %1076 = vmatprep.subr.mxu0 %v1069
        %1077 = vmatpush1.msra.mxu0 %v1068
        %1078 = vmatprep.subr.mxu0 %v1061
        %1079 = vmatpush1.msra.mxu0 %v1060
        %1080 = vmatprep.subr.mxu0 %v1053
        %1081 = vmatpush1.msra.mxu0 %v1052
        %1082 = vmatprep.subr.mxu0 %v1045
        %1083 = vmatpush1.msra.mxu0 %v1044
        %1084 = vmatprep.subr.mxu0 %v1037
        %1085 = vmatpush1.msra.mxu0 %v1036
        %1086 = vmatprep.subr.mxu0 %v1029
        %1087 = vmatpush1.msra.mxu0 %v1028
        %1088 = vmatprep.subr.mxu0 %v1021
        %1089 = vmatpush1.msra.mxu0 %v1020
        %1090 = vmatprep.subr.mxu0 %v1013
        %1091 = vmatpush1.msra.mxu0 %v1012
        %1092 = vmatprep.subr.mxu0 %v1005
        %1093 = vmatpush1.msra.mxu0 %v1004
        %1094 = vmatprep.subr.mxu0 %v997
        %1095 = vmatpush1.msra.mxu0 %v996
        %1096 = vmatprep.subr.mxu0 %v989
        %1097 = vmatpush1.msra.mxu0 %v988
        %1098 = vmatprep.subr.mxu0 %v981
        %1099 = vmatpush1.msra.mxu0 %v980
        %1100 = vmatprep.subr.mxu0 %v973
        %1101 = vmatpush1.msra.mxu0 %v972
        %1102 = vmatprep.subr.mxu0 %v965
        %1103 = vmatpush1.msra.mxu0 %v964
        %1104 = vmatprep.subr.mxu0 %v957
        %1105 = vmatpush1.msra.mxu0 %v956
        %1106 = vmatprep.subr.mxu0 %v949
        %1107 = vmatpush1.msra.mxu0 %v948
        %1108 = vmatprep.subr.mxu0 0.0
        %1109 = vmatpush2.msra.mxu0 0.0
        %1110 = vmatprep.subr.mxu0 0.0
        %1111 = vmatpush2.msra.mxu0 0.0
        %1112 = vmatprep.subr.mxu0 0.0
        %1113 = vmatpush2.msra.mxu0 0.0
        %1114 = vmatprep.subr.mxu0 0.0
        %1115 = vmatpush2.msra.mxu0 0.0
        %1116 = vmatprep.subr.mxu0 0.0
        %1117 = vmatpush2.msra.mxu0 0.0
        %1118 = vmatprep.subr.mxu0 0.0
        %1119 = vmatpush2.msra.mxu0 0.0
        %1120 = vmatprep.subr.mxu0 0.0
        %1121 = vmatpush2.msra.mxu0 0.0
        %1122 = vmatprep.subr.mxu0 0.0
        %1123 = vmatpush2.msra.mxu0 0.0
        %1124 = vmatprep.subr.mxu0 0.0
        %1125 = vmatpush2.msra.mxu0 0.0
        %1126 = vmatprep.subr.mxu0 0.0
        %1127 = vmatpush2.msra.mxu0 0.0
        %1128 = vmatprep.subr.mxu0 0.0
        %1129 = vmatpush2.msra.mxu0 0.0
        %1130 = vmatprep.subr.mxu0 0.0
        %1131 = vmatpush2.msra.mxu0 0.0
        %1132 = vmatprep.subr.mxu0 0.0
        %1133 = vmatpush2.msra.mxu0 0.0
        %1134 = vmatprep.subr.mxu0 0.0
        %1135 = vmatpush2.msra.mxu0 0.0
        %1136 = vmatprep.subr.mxu0 0.0
        %1137 = vmatpush2.msra.mxu0 0.0
        %1138 = vmatprep.subr.mxu0 0.0
        %1139 = vmatpush2.msra.mxu0 0.0
        %1140 = vmatprep.mubr.f32.mxu0 0.0
        %1141 = vmatmul.mubr.f32.gmra.mxu0 %v932
        %v1142 = vpop.f32.mrf.mxu0
        %v1143 = vadd.f32 0.0, %v1142
        %v1144 = vpop.f32.mrf.mxu0
        %v1145 = vadd.f32 0.0, %v1144
        %1146 = vmatprep.mubr.f32.mxu0 0.0
        %1147 = vmatmul.mubr.f32.gmra.mxu0 %v933
        %v1148 = vpop.f32.mrf.mxu0
        %v1149 = vadd.f32 0.0, %v1148
        %v1150 = vpop.f32.mrf.mxu0
        %v1151 = vadd.f32 0.0, %v1150
        %1152 = vmatprep.mubr.f32.mxu0 0.0
        %1153 = vmatmul.mubr.f32.gmra.mxu0 %v934
        %v1154 = vpop.f32.mrf.mxu0
        %v1155 = vadd.f32 0.0, %v1154
        %v1156 = vpop.f32.mrf.mxu0
        %v1157 = vadd.f32 0.0, %v1156
        %1158 = vmatprep.mubr.f32.mxu0 0.0
        %1159 = vmatmul.mubr.f32.gmra.mxu0 %v935
        %v1160 = vpop.f32.mrf.mxu0
        %v1161 = vadd.f32 0.0, %v1160
        %v1162 = vpop.f32.mrf.mxu0
        %v1163 = vadd.f32 0.0, %v1162
        %1164 = vmatprep.mubr.f32.mxu0 0.0
        %1165 = vmatmul.mubr.f32.gmra.mxu0 %v936
        %v1166 = vpop.f32.mrf.mxu0
        %v1167 = vadd.f32 0.0, %v1166
        %v1168 = vpop.f32.mrf.mxu0
        %v1169 = vadd.f32 0.0, %v1168
        %1170 = vmatprep.mubr.f32.mxu0 0.0
        %1171 = vmatmul.mubr.f32.gmra.mxu0 %v937
        %v1172 = vpop.f32.mrf.mxu0
        %v1173 = vadd.f32 0.0, %v1172
        %v1174 = vpop.f32.mrf.mxu0
        %v1175 = vadd.f32 0.0, %v1174
        %1176 = vmatprep.mubr.f32.mxu0 0.0
        %1177 = vmatmul.mubr.f32.gmra.mxu0 %v938
        %v1178 = vpop.f32.mrf.mxu0
        %v1179 = vadd.f32 0.0, %v1178
        %v1180 = vpop.f32.mrf.mxu0
        %v1181 = vadd.f32 0.0, %v1180
        %1182 = vmatprep.mubr.f32.mxu0 0.0
        %1183 = vmatmul.mubr.f32.gmra.mxu0 %v939
        %v1184 = vpop.f32.mrf.mxu0
        %v1185 = vadd.f32 0.0, %v1184
        %v1186 = vpop.f32.mrf.mxu0
        %v1187 = vadd.f32 0.0, %v1186
        %1188 = vmatprep.mubr.f32.mxu0 0.0
        %1189 = vmatmul.mubr.f32.gmra.mxu0 %v940
        %v1190 = vpop.f32.mrf.mxu0
        %v1191 = vadd.f32 0.0, %v1190
        %v1192 = vpop.f32.mrf.mxu0
        %v1193 = vadd.f32 0.0, %v1192
        %1194 = vmatprep.mubr.f32.mxu0 0.0
        %1195 = vmatmul.mubr.f32.gmra.mxu0 %v941
        %v1196 = vpop.f32.mrf.mxu0
        %v1197 = vadd.f32 0.0, %v1196
        %v1198 = vpop.f32.mrf.mxu0
        %v1199 = vadd.f32 0.0, %v1198
        %1200 = vmatprep.mubr.f32.mxu0 0.0
        %1201 = vmatmul.mubr.f32.gmra.mxu0 %v942
        %v1202 = vpop.f32.mrf.mxu0
        %v1203 = vadd.f32 0.0, %v1202
        %v1204 = vpop.f32.mrf.mxu0
        %v1205 = vadd.f32 0.0, %v1204
        %1206 = vmatprep.mubr.f32.mxu0 0.0
        %1207 = vmatmul.mubr.f32.gmra.mxu0 %v943
        %v1208 = vpop.f32.mrf.mxu0
        %v1209 = vadd.f32 0.0, %v1208
        %v1210 = vpop.f32.mrf.mxu0
        %v1211 = vadd.f32 0.0, %v1210
        %1212 = vmatprep.mubr.f32.mxu0 0.0
        %1213 = vmatmul.mubr.f32.gmra.mxu0 %v944
        %v1214 = vpop.f32.mrf.mxu0
        %v1215 = vadd.f32 0.0, %v1214
        %v1216 = vpop.f32.mrf.mxu0
        %v1217 = vadd.f32 0.0, %v1216
        %1218 = vmatprep.mubr.f32.mxu0 0.0
        %1219 = vmatmul.mubr.f32.gmra.mxu0 %v945
        %v1220 = vpop.f32.mrf.mxu0
        %v1221 = vadd.f32 0.0, %v1220
        %v1222 = vpop.f32.mrf.mxu0
        %v1223 = vadd.f32 0.0, %v1222
        %1224 = vmatprep.mubr.f32.mxu0 0.0
        %1225 = vmatmul.mubr.f32.gmra.mxu0 %v946
        %v1226 = vpop.f32.mrf.mxu0
        %v1227 = vadd.f32 0.0, %v1226
        %v1228 = vpop.f32.mrf.mxu0
        %v1229 = vadd.f32 0.0, %v1228
        %1230 = vmatprep.mubr.f32.mxu0 0.0
        %1231 = vmatmul.mubr.f32.gmra.mxu0 %v947
        %v1232 = vpop.f32.mrf.mxu0
        %v1233 = vadd.f32 0.0, %v1232
        %v1234 = vpop.f32.mrf.mxu0
        %v1235 = vadd.f32 0.0, %v1234
        %1236 = vdwg.mxu0
        %1237 = vmatprep.subr.mxu0 %v1071
        %1238 = vmatpush1.msra.mxu0 %v1070
        %1239 = vmatprep.subr.mxu0 %v1063
        %1240 = vmatpush1.msra.mxu0 %v1062
        %1241 = vmatprep.subr.mxu0 %v1055
        %1242 = vmatpush1.msra.mxu0 %v1054
        %1243 = vmatprep.subr.mxu0 %v1047
        %1244 = vmatpush1.msra.mxu0 %v1046
        %1245 = vmatprep.subr.mxu0 %v1039
        %1246 = vmatpush1.msra.mxu0 %v1038
        %1247 = vmatprep.subr.mxu0 %v1031
        %1248 = vmatpush1.msra.mxu0 %v1030
        %1249 = vmatprep.subr.mxu0 %v1023
        %1250 = vmatpush1.msra.mxu0 %v1022
        %1251 = vmatprep.subr.mxu0 %v1015
        %1252 = vmatpush1.msra.mxu0 %v1014
        %1253 = vmatprep.subr.mxu0 %v1007
        %1254 = vmatpush1.msra.mxu0 %v1006
        %1255 = vmatprep.subr.mxu0 %v999
        %1256 = vmatpush1.msra.mxu0 %v998
        %1257 = vmatprep.subr.mxu0 %v991
        %1258 = vmatpush1.msra.mxu0 %v990
        %1259 = vmatprep.subr.mxu0 %v983
        %1260 = vmatpush1.msra.mxu0 %v982
        %1261 = vmatprep.subr.mxu0 %v975
        %1262 = vmatpush1.msra.mxu0 %v974
        %1263 = vmatprep.subr.mxu0 %v967
        %1264 = vmatpush1.msra.mxu0 %v966
        %1265 = vmatprep.subr.mxu0 %v959
        %1266 = vmatpush1.msra.mxu0 %v958
        %1267 = vmatprep.subr.mxu0 %v951
        %1268 = vmatpush1.msra.mxu0 %v950
        %1269 = vmatprep.subr.mxu0 0.0
        %1270 = vmatpush2.msra.mxu0 0.0
        %1271 = vmatprep.subr.mxu0 0.0
        %1272 = vmatpush2.msra.mxu0 0.0
        %1273 = vmatprep.subr.mxu0 0.0
        %1274 = vmatpush2.msra.mxu0 0.0
        %1275 = vmatprep.subr.mxu0 0.0
        %1276 = vmatpush2.msra.mxu0 0.0
        %1277 = vmatprep.subr.mxu0 0.0
        %1278 = vmatpush2.msra.mxu0 0.0
        %1279 = vmatprep.subr.mxu0 0.0
        %1280 = vmatpush2.msra.mxu0 0.0
        %1281 = vmatprep.subr.mxu0 0.0
        %1282 = vmatpush2.msra.mxu0 0.0
        %1283 = vmatprep.subr.mxu0 0.0
        %1284 = vmatpush2.msra.mxu0 0.0
        %1285 = vmatprep.subr.mxu0 0.0
        %1286 = vmatpush2.msra.mxu0 0.0
        %1287 = vmatprep.subr.mxu0 0.0
        %1288 = vmatpush2.msra.mxu0 0.0
        %1289 = vmatprep.subr.mxu0 0.0
        %1290 = vmatpush2.msra.mxu0 0.0
        %1291 = vmatprep.subr.mxu0 0.0
        %1292 = vmatpush2.msra.mxu0 0.0
        %1293 = vmatprep.subr.mxu0 0.0
        %1294 = vmatpush2.msra.mxu0 0.0
        %1295 = vmatprep.subr.mxu0 0.0
        %1296 = vmatpush2.msra.mxu0 0.0
        %1297 = vmatprep.subr.mxu0 0.0
        %1298 = vmatpush2.msra.mxu0 0.0
        %1299 = vmatprep.subr.mxu0 0.0
        %1300 = vmatpush2.msra.mxu0 0.0
        %1301 = vmatprep.mubr.f32.mxu0 0.0
        %1302 = vmatmul.mubr.f32.gmra.mxu0 %v932
        %v1303 = vpop.f32.mrf.mxu0
        %v1304 = vadd.f32 0.0, %v1303
        %v1305 = vpop.f32.mrf.mxu0
        %v1306 = vadd.f32 0.0, %v1305
        %1307 = vmatprep.mubr.f32.mxu0 0.0
        %1308 = vmatmul.mubr.f32.gmra.mxu0 %v933
        %v1309 = vpop.f32.mrf.mxu0
        %v1310 = vadd.f32 0.0, %v1309
        %v1311 = vpop.f32.mrf.mxu0
        %v1312 = vadd.f32 0.0, %v1311
        %1313 = vmatprep.mubr.f32.mxu0 0.0
        %1314 = vmatmul.mubr.f32.gmra.mxu0 %v934
        %v1315 = vpop.f32.mrf.mxu0
        %v1316 = vadd.f32 0.0, %v1315
        %v1317 = vpop.f32.mrf.mxu0
        %v1318 = vadd.f32 0.0, %v1317
        %1319 = vmatprep.mubr.f32.mxu0 0.0
        %1320 = vmatmul.mubr.f32.gmra.mxu0 %v935
        %v1321 = vpop.f32.mrf.mxu0
        %v1322 = vadd.f32 0.0, %v1321
        %v1323 = vpop.f32.mrf.mxu0
        %v1324 = vadd.f32 0.0, %v1323
        %1325 = vmatprep.mubr.f32.mxu0 0.0
        %1326 = vmatmul.mubr.f32.gmra.mxu0 %v936
        %v1327 = vpop.f32.mrf.mxu0
        %v1328 = vadd.f32 0.0, %v1327
        %v1329 = vpop.f32.mrf.mxu0
        %v1330 = vadd.f32 0.0, %v1329
        %1331 = vmatprep.mubr.f32.mxu0 0.0
        %1332 = vmatmul.mubr.f32.gmra.mxu0 %v937
        %v1333 = vpop.f32.mrf.mxu0
        %v1334 = vadd.f32 0.0, %v1333
        %v1335 = vpop.f32.mrf.mxu0
        %v1336 = vadd.f32 0.0, %v1335
        %1337 = vmatprep.mubr.f32.mxu0 0.0
        %1338 = vmatmul.mubr.f32.gmra.mxu0 %v938
        %v1339 = vpop.f32.mrf.mxu0
        %v1340 = vadd.f32 0.0, %v1339
        %v1341 = vpop.f32.mrf.mxu0
        %v1342 = vadd.f32 0.0, %v1341
        %1343 = vmatprep.mubr.f32.mxu0 0.0
        %1344 = vmatmul.mubr.f32.gmra.mxu0 %v939
        %v1345 = vpop.f32.mrf.mxu0
        %v1346 = vadd.f32 0.0, %v1345
        %v1347 = vpop.f32.mrf.mxu0
        %v1348 = vadd.f32 0.0, %v1347
        %1349 = vmatprep.mubr.f32.mxu0 0.0
        %1350 = vmatmul.mubr.f32.gmra.mxu0 %v940
        %v1351 = vpop.f32.mrf.mxu0
        %v1352 = vadd.f32 0.0, %v1351
        %v1353 = vpop.f32.mrf.mxu0
        %v1354 = vadd.f32 0.0, %v1353
        %1355 = vmatprep.mubr.f32.mxu0 0.0
        %1356 = vmatmul.mubr.f32.gmra.mxu0 %v941
        %v1357 = vpop.f32.mrf.mxu0
        %v1358 = vadd.f32 0.0, %v1357
        %v1359 = vpop.f32.mrf.mxu0
        %v1360 = vadd.f32 0.0, %v1359
        %1361 = vmatprep.mubr.f32.mxu0 0.0
        %1362 = vmatmul.mubr.f32.gmra.mxu0 %v942
        %v1363 = vpop.f32.mrf.mxu0
        %v1364 = vadd.f32 0.0, %v1363
        %v1365 = vpop.f32.mrf.mxu0
        %v1366 = vadd.f32 0.0, %v1365
        %1367 = vmatprep.mubr.f32.mxu0 0.0
        %1368 = vmatmul.mubr.f32.gmra.mxu0 %v943
        %v1369 = vpop.f32.mrf.mxu0
        %v1370 = vadd.f32 0.0, %v1369
        %v1371 = vpop.f32.mrf.mxu0
        %v1372 = vadd.f32 0.0, %v1371
        %1373 = vmatprep.mubr.f32.mxu0 0.0
        %1374 = vmatmul.mubr.f32.gmra.mxu0 %v944
        %v1375 = vpop.f32.mrf.mxu0
        %v1376 = vadd.f32 0.0, %v1375
        %v1377 = vpop.f32.mrf.mxu0
        %v1378 = vadd.f32 0.0, %v1377
        %1379 = vmatprep.mubr.f32.mxu0 0.0
        %1380 = vmatmul.mubr.f32.gmra.mxu0 %v945
        %v1381 = vpop.f32.mrf.mxu0
        %v1382 = vadd.f32 0.0, %v1381
        %v1383 = vpop.f32.mrf.mxu0
        %v1384 = vadd.f32 0.0, %v1383
        %1385 = vmatprep.mubr.f32.mxu0 0.0
        %1386 = vmatmul.mubr.f32.gmra.mxu0 %v946
        %v1387 = vpop.f32.mrf.mxu0
        %v1388 = vadd.f32 0.0, %v1387
        %v1389 = vpop.f32.mrf.mxu0
        %v1390 = vadd.f32 0.0, %v1389
        %1391 = vmatprep.mubr.f32.mxu0 0.0
        %1392 = vmatmul.mubr.f32.gmra.mxu0 %v947
        %v1393 = vpop.f32.mrf.mxu0
        %v1394 = vadd.f32 0.0, %v1393
        %v1395 = vpop.f32.mrf.mxu0
        %v1396 = vadd.f32 0.0, %v1395
        %1397 = vdwg.mxu0
        %1398 = vmatprep.subr.mxu0 %v1073
        %1399 = vmatpush1.msra.mxu0 %v1072
        %1400 = vmatprep.subr.mxu0 %v1065
        %1401 = vmatpush1.msra.mxu0 %v1064
        %1402 = vmatprep.subr.mxu0 %v1057
        %1403 = vmatpush1.msra.mxu0 %v1056
        %1404 = vmatprep.subr.mxu0 %v1049
        %1405 = vmatpush1.msra.mxu0 %v1048
        %1406 = vmatprep.subr.mxu0 %v1041
        %1407 = vmatpush1.msra.mxu0 %v1040
        %1408 = vmatprep.subr.mxu0 %v1033
        %1409 = vmatpush1.msra.mxu0 %v1032
        %1410 = vmatprep.subr.mxu0 %v1025
        %1411 = vmatpush1.msra.mxu0 %v1024
        %1412 = vmatprep.subr.mxu0 %v1017
        %1413 = vmatpush1.msra.mxu0 %v1016
        %1414 = vmatprep.subr.mxu0 %v1009
        %1415 = vmatpush1.msra.mxu0 %v1008
        %1416 = vmatprep.subr.mxu0 %v1001
        %1417 = vmatpush1.msra.mxu0 %v1000
        %1418 = vmatprep.subr.mxu0 %v993
        %1419 = vmatpush1.msra.mxu0 %v992
        %1420 = vmatprep.subr.mxu0 %v985
        %1421 = vmatpush1.msra.mxu0 %v984
        %1422 = vmatprep.subr.mxu0 %v977
        %1423 = vmatpush1.msra.mxu0 %v976
        %1424 = vmatprep.subr.mxu0 %v969
        %1425 = vmatpush1.msra.mxu0 %v968
        %1426 = vmatprep.subr.mxu0 %v961
        %1427 = vmatpush1.msra.mxu0 %v960
        %1428 = vmatprep.subr.mxu0 %v953
        %1429 = vmatpush1.msra.mxu0 %v952
        %1430 = vmatprep.subr.mxu0 0.0
        %1431 = vmatpush2.msra.mxu0 0.0
        %1432 = vmatprep.subr.mxu0 0.0
        %1433 = vmatpush2.msra.mxu0 0.0
        %1434 = vmatprep.subr.mxu0 0.0
        %1435 = vmatpush2.msra.mxu0 0.0
        %1436 = vmatprep.subr.mxu0 0.0
        %1437 = vmatpush2.msra.mxu0 0.0
        %1438 = vmatprep.subr.mxu0 0.0
        %1439 = vmatpush2.msra.mxu0 0.0
        %1440 = vmatprep.subr.mxu0 0.0
        %1441 = vmatpush2.msra.mxu0 0.0
        %1442 = vmatprep.subr.mxu0 0.0
        %1443 = vmatpush2.msra.mxu0 0.0
        %1444 = vmatprep.subr.mxu0 0.0
        %1445 = vmatpush2.msra.mxu0 0.0
        %1446 = vmatprep.subr.mxu0 0.0
        %1447 = vmatpush2.msra.mxu0 0.0
        %1448 = vmatprep.subr.mxu0 0.0
        %1449 = vmatpush2.msra.mxu0 0.0
        %1450 = vmatprep.subr.mxu0 0.0
        %1451 = vmatpush2.msra.mxu0 0.0
        %1452 = vmatprep.subr.mxu0 0.0
        %1453 = vmatpush2.msra.mxu0 0.0
        %1454 = vmatprep.subr.mxu0 0.0
        %1455 = vmatpush2.msra.mxu0 0.0
        %1456 = vmatprep.subr.mxu0 0.0
        %1457 = vmatpush2.msra.mxu0 0.0
        %1458 = vmatprep.subr.mxu0 0.0
        %1459 = vmatpush2.msra.mxu0 0.0
        %1460 = vmatprep.subr.mxu0 0.0
        %1461 = vmatpush2.msra.mxu0 0.0
        %1462 = vmatprep.mubr.f32.mxu0 0.0
        %1463 = vmatmul.mubr.f32.gmra.mxu0 %v932
        %v1464 = vpop.f32.mrf.mxu0
        %v1465 = vadd.f32 0.0, %v1464
        %v1466 = vpop.f32.mrf.mxu0
        %v1467 = vadd.f32 0.0, %v1466
        %1468 = vmatprep.mubr.f32.mxu0 0.0
        %1469 = vmatmul.mubr.f32.gmra.mxu0 %v933
        %v1470 = vpop.f32.mrf.mxu0
        %v1471 = vadd.f32 0.0, %v1470
        %v1472 = vpop.f32.mrf.mxu0
        %v1473 = vadd.f32 0.0, %v1472
        %1474 = vmatprep.mubr.f32.mxu0 0.0
        %1475 = vmatmul.mubr.f32.gmra.mxu0 %v934
        %v1476 = vpop.f32.mrf.mxu0
        %v1477 = vadd.f32 0.0, %v1476
        %v1478 = vpop.f32.mrf.mxu0
        %v1479 = vadd.f32 0.0, %v1478
        %1480 = vmatprep.mubr.f32.mxu0 0.0
        %1481 = vmatmul.mubr.f32.gmra.mxu0 %v935
        %v1482 = vpop.f32.mrf.mxu0
        %v1483 = vadd.f32 0.0, %v1482
        %v1484 = vpop.f32.mrf.mxu0
        %v1485 = vadd.f32 0.0, %v1484
        %1486 = vmatprep.mubr.f32.mxu0 0.0
        %1487 = vmatmul.mubr.f32.gmra.mxu0 %v936
        %v1488 = vpop.f32.mrf.mxu0
        %v1489 = vadd.f32 0.0, %v1488
        %v1490 = vpop.f32.mrf.mxu0
        %v1491 = vadd.f32 0.0, %v1490
        %1492 = vmatprep.mubr.f32.mxu0 0.0
        %1493 = vmatmul.mubr.f32.gmra.mxu0 %v937
        %v1494 = vpop.f32.mrf.mxu0
        %v1495 = vadd.f32 0.0, %v1494
        %v1496 = vpop.f32.mrf.mxu0
        %v1497 = vadd.f32 0.0, %v1496
        %1498 = vmatprep.mubr.f32.mxu0 0.0
        %1499 = vmatmul.mubr.f32.gmra.mxu0 %v938
        %v1500 = vpop.f32.mrf.mxu0
        %v1501 = vadd.f32 0.0, %v1500
        %v1502 = vpop.f32.mrf.mxu0
        %v1503 = vadd.f32 0.0, %v1502
        %1504 = vmatprep.mubr.f32.mxu0 0.0
        %1505 = vmatmul.mubr.f32.gmra.mxu0 %v939
        %v1506 = vpop.f32.mrf.mxu0
        %v1507 = vadd.f32 0.0, %v1506
        %v1508 = vpop.f32.mrf.mxu0
        %v1509 = vadd.f32 0.0, %v1508
        %1510 = vmatprep.mubr.f32.mxu0 0.0
        %1511 = vmatmul.mubr.f32.gmra.mxu0 %v940
        %v1512 = vpop.f32.mrf.mxu0
        %v1513 = vadd.f32 0.0, %v1512
        %v1514 = vpop.f32.mrf.mxu0
        %v1515 = vadd.f32 0.0, %v1514
        %1516 = vmatprep.mubr.f32.mxu0 0.0
        %1517 = vmatmul.mubr.f32.gmra.mxu0 %v941
        %v1518 = vpop.f32.mrf.mxu0
        %v1519 = vadd.f32 0.0, %v1518
        %v1520 = vpop.f32.mrf.mxu0
        %v1521 = vadd.f32 0.0, %v1520
        %1522 = vmatprep.mubr.f32.mxu0 0.0
        %1523 = vmatmul.mubr.f32.gmra.mxu0 %v942
        %v1524 = vpop.f32.mrf.mxu0
        %v1525 = vadd.f32 0.0, %v1524
        %v1526 = vpop.f32.mrf.mxu0
        %v1527 = vadd.f32 0.0, %v1526
        %1528 = vmatprep.mubr.f32.mxu0 0.0
        %1529 = vmatmul.mubr.f32.gmra.mxu0 %v943
        %v1530 = vpop.f32.mrf.mxu0
        %v1531 = vadd.f32 0.0, %v1530
        %v1532 = vpop.f32.mrf.mxu0
        %v1533 = vadd.f32 0.0, %v1532
        %1534 = vmatprep.mubr.f32.mxu0 0.0
        %1535 = vmatmul.mubr.f32.gmra.mxu0 %v944
        %v1536 = vpop.f32.mrf.mxu0
        %v1537 = vadd.f32 0.0, %v1536
        %v1538 = vpop.f32.mrf.mxu0
        %v1539 = vadd.f32 0.0, %v1538
        %1540 = vmatprep.mubr.f32.mxu0 0.0
        %1541 = vmatmul.mubr.f32.gmra.mxu0 %v945
        %v1542 = vpop.f32.mrf.mxu0
        %v1543 = vadd.f32 0.0, %v1542
        %v1544 = vpop.f32.mrf.mxu0
        %v1545 = vadd.f32 0.0, %v1544
        %1546 = vmatprep.mubr.f32.mxu0 0.0
        %1547 = vmatmul.mubr.f32.gmra.mxu0 %v946
        %v1548 = vpop.f32.mrf.mxu0
        %v1549 = vadd.f32 0.0, %v1548
        %v1550 = vpop.f32.mrf.mxu0
        %v1551 = vadd.f32 0.0, %v1550
        %1552 = vmatprep.mubr.f32.mxu0 0.0
        %1553 = vmatmul.mubr.f32.gmra.mxu0 %v947
        %v1554 = vpop.f32.mrf.mxu0
        %v1555 = vadd.f32 0.0, %v1554
        %v1556 = vpop.f32.mrf.mxu0
        %v1557 = vadd.f32 0.0, %v1556
        %1558 = vdwg.mxu0
        %1559 = vmatprep.subr.mxu0 %v1075
        %1560 = vmatpush1.msra.mxu0 %v1074
        %1561 = vmatprep.subr.mxu0 %v1067
        %1562 = vmatpush1.msra.mxu0 %v1066
        %1563 = vmatprep.subr.mxu0 %v1059
        %1564 = vmatpush1.msra.mxu0 %v1058
        %1565 = vmatprep.subr.mxu0 %v1051
        %1566 = vmatpush1.msra.mxu0 %v1050
        %1567 = vmatprep.subr.mxu0 %v1043
        %1568 = vmatpush1.msra.mxu0 %v1042
        %1569 = vmatprep.subr.mxu0 %v1035
        %1570 = vmatpush1.msra.mxu0 %v1034
        %1571 = vmatprep.subr.mxu0 %v1027
        %1572 = vmatpush1.msra.mxu0 %v1026
        %1573 = vmatprep.subr.mxu0 %v1019
        %1574 = vmatpush1.msra.mxu0 %v1018
        %1575 = vmatprep.subr.mxu0 %v1011
        %1576 = vmatpush1.msra.mxu0 %v1010
        %1577 = vmatprep.subr.mxu0 %v1003
        %1578 = vmatpush1.msra.mxu0 %v1002
        %1579 = vmatprep.subr.mxu0 %v995
        %1580 = vmatpush1.msra.mxu0 %v994
        %1581 = vmatprep.subr.mxu0 %v987
        %1582 = vmatpush1.msra.mxu0 %v986
        %1583 = vmatprep.subr.mxu0 %v979
        %1584 = vmatpush1.msra.mxu0 %v978
        %1585 = vmatprep.subr.mxu0 %v971
        %1586 = vmatpush1.msra.mxu0 %v970
        %1587 = vmatprep.subr.mxu0 %v963
        %1588 = vmatpush1.msra.mxu0 %v962
        %1589 = vmatprep.subr.mxu0 %v955
        %1590 = vmatpush1.msra.mxu0 %v954
        %1591 = vmatprep.subr.mxu0 0.0
        %1592 = vmatpush2.msra.mxu0 0.0
        %1593 = vmatprep.subr.mxu0 0.0
        %1594 = vmatpush2.msra.mxu0 0.0
        %1595 = vmatprep.subr.mxu0 0.0
        %1596 = vmatpush2.msra.mxu0 0.0
        %1597 = vmatprep.subr.mxu0 0.0
        %1598 = vmatpush2.msra.mxu0 0.0
        %1599 = vmatprep.subr.mxu0 0.0
        %1600 = vmatpush2.msra.mxu0 0.0
        %1601 = vmatprep.subr.mxu0 0.0
        %1602 = vmatpush2.msra.mxu0 0.0
        %1603 = vmatprep.subr.mxu0 0.0
        %1604 = vmatpush2.msra.mxu0 0.0
        %1605 = vmatprep.subr.mxu0 0.0
        %1606 = vmatpush2.msra.mxu0 0.0
        %1607 = vmatprep.subr.mxu0 0.0
        %1608 = vmatpush2.msra.mxu0 0.0
        %1609 = vmatprep.subr.mxu0 0.0
        %1610 = vmatpush2.msra.mxu0 0.0
        %1611 = vmatprep.subr.mxu0 0.0
        %1612 = vmatpush2.msra.mxu0 0.0
        %1613 = vmatprep.subr.mxu0 0.0
        %1614 = vmatpush2.msra.mxu0 0.0
        %1615 = vmatprep.subr.mxu0 0.0
        %1616 = vmatpush2.msra.mxu0 0.0
        %1617 = vmatprep.subr.mxu0 0.0
        %1618 = vmatpush2.msra.mxu0 0.0
        %1619 = vmatprep.subr.mxu0 0.0
        %1620 = vmatpush2.msra.mxu0 0.0
        %1621 = vmatprep.subr.mxu0 0.0
        %1622 = vmatpush2.msra.mxu0 0.0
        %1623 = vmatprep.mubr.f32.mxu0 0.0
        %1624 = vmatmul.mubr.f32.gmra.mxu0 %v932
        %v1625 = vpop.f32.mrf.mxu0
        %v1626 = vadd.f32 0.0, %v1625
        %v1627 = vpop.f32.mrf.mxu0
        %v1628 = vadd.f32 0.0, %v1627
        %1629 = vmatprep.mubr.f32.mxu0 0.0
        %1630 = vmatmul.mubr.f32.gmra.mxu0 %v933
        %v1631 = vpop.f32.mrf.mxu0
        %v1632 = vadd.f32 0.0, %v1631
        %v1633 = vpop.f32.mrf.mxu0
        %v1634 = vadd.f32 0.0, %v1633
        %1635 = vmatprep.mubr.f32.mxu0 0.0
        %1636 = vmatmul.mubr.f32.gmra.mxu0 %v934
        %v1637 = vpop.f32.mrf.mxu0
        %v1638 = vadd.f32 0.0, %v1637
        %v1639 = vpop.f32.mrf.mxu0
        %v1640 = vadd.f32 0.0, %v1639
        %1641 = vmatprep.mubr.f32.mxu0 0.0
        %1642 = vmatmul.mubr.f32.gmra.mxu0 %v935
        %v1643 = vpop.f32.mrf.mxu0
        %v1644 = vadd.f32 0.0, %v1643
        %v1645 = vpop.f32.mrf.mxu0
        %v1646 = vadd.f32 0.0, %v1645
        %1647 = vmatprep.mubr.f32.mxu0 0.0
        %1648 = vmatmul.mubr.f32.gmra.mxu0 %v936
        %v1649 = vpop.f32.mrf.mxu0
        %v1650 = vadd.f32 0.0, %v1649
        %v1651 = vpop.f32.mrf.mxu0
        %v1652 = vadd.f32 0.0, %v1651
        %1653 = vmatprep.mubr.f32.mxu0 0.0
        %1654 = vmatmul.mubr.f32.gmra.mxu0 %v937
        %v1655 = vpop.f32.mrf.mxu0
        %v1656 = vadd.f32 0.0, %v1655
        %v1657 = vpop.f32.mrf.mxu0
        %v1658 = vadd.f32 0.0, %v1657
        %1659 = vmatprep.mubr.f32.mxu0 0.0
        %1660 = vmatmul.mubr.f32.gmra.mxu0 %v938
        %v1661 = vpop.f32.mrf.mxu0
        %v1662 = vadd.f32 0.0, %v1661
        %v1663 = vpop.f32.mrf.mxu0
        %v1664 = vadd.f32 0.0, %v1663
        %1665 = vmatprep.mubr.f32.mxu0 0.0
        %1666 = vmatmul.mubr.f32.gmra.mxu0 %v939
        %v1667 = vpop.f32.mrf.mxu0
        %v1668 = vadd.f32 0.0, %v1667
        %v1669 = vpop.f32.mrf.mxu0
        %v1670 = vadd.f32 0.0, %v1669
        %1671 = vmatprep.mubr.f32.mxu0 0.0
        %1672 = vmatmul.mubr.f32.gmra.mxu0 %v940
        %v1673 = vpop.f32.mrf.mxu0
        %v1674 = vadd.f32 0.0, %v1673
        %v1675 = vpop.f32.mrf.mxu0
        %v1676 = vadd.f32 0.0, %v1675
        %1677 = vmatprep.mubr.f32.mxu0 0.0
        %1678 = vmatmul.mubr.f32.gmra.mxu0 %v941
        %v1679 = vpop.f32.mrf.mxu0
        %v1680 = vadd.f32 0.0, %v1679
        %v1681 = vpop.f32.mrf.mxu0
        %v1682 = vadd.f32 0.0, %v1681
        %1683 = vmatprep.mubr.f32.mxu0 0.0
        %1684 = vmatmul.mubr.f32.gmra.mxu0 %v942
        %v1685 = vpop.f32.mrf.mxu0
        %v1686 = vadd.f32 0.0, %v1685
        %v1687 = vpop.f32.mrf.mxu0
        %v1688 = vadd.f32 0.0, %v1687
        %1689 = vmatprep.mubr.f32.mxu0 0.0
        %1690 = vmatmul.mubr.f32.gmra.mxu0 %v943
        %v1691 = vpop.f32.mrf.mxu0
        %v1692 = vadd.f32 0.0, %v1691
        %v1693 = vpop.f32.mrf.mxu0
        %v1694 = vadd.f32 0.0, %v1693
        %1695 = vmatprep.mubr.f32.mxu0 0.0
        %1696 = vmatmul.mubr.f32.gmra.mxu0 %v944
        %v1697 = vpop.f32.mrf.mxu0
        %v1698 = vadd.f32 0.0, %v1697
        %v1699 = vpop.f32.mrf.mxu0
        %v1700 = vadd.f32 0.0, %v1699
        %1701 = vmatprep.mubr.f32.mxu0 0.0
        %1702 = vmatmul.mubr.f32.gmra.mxu0 %v945
        %v1703 = vpop.f32.mrf.mxu0
        %v1704 = vadd.f32 0.0, %v1703
        %v1705 = vpop.f32.mrf.mxu0
        %v1706 = vadd.f32 0.0, %v1705
        %1707 = vmatprep.mubr.f32.mxu0 0.0
        %1708 = vmatmul.mubr.f32.gmra.mxu0 %v946
        %v1709 = vpop.f32.mrf.mxu0
        %v1710 = vadd.f32 0.0, %v1709
        %v1711 = vpop.f32.mrf.mxu0
        %v1712 = vadd.f32 0.0, %v1711
        %1713 = vmatprep.mubr.f32.mxu0 0.0
        %1714 = vmatmul.mubr.f32.gmra.mxu0 %v947
        %v1715 = vpop.f32.mrf.mxu0
        %v1716 = vadd.f32 0.0, %v1715
        %v1717 = vpop.f32.mrf.mxu0
        %v1718 = vadd.f32 0.0, %v1717
        %1719 = vdwg.mxu0
        %v1720 = vld [vmem:[%s8] sm:$0xff]
        %v1722 = vlaneseq
        %v1723 = vshrl.u32 %v1722, 7
        %v1724 = vsub.s32 0, %v1723
        %v1725 = vrot.slane %v1720, %v1724
        %v1726 = vlaneseq
        %v1727 = vshrl.u32 %v1726, 7
        %v1728 = vsub.s32 1, %v1727
        %v1729 = vrot.slane %v1720, %v1728
        %v1730 = vlaneseq
        %v1731 = vshrl.u32 %v1730, 7
        %v1732 = vsub.s32 2, %v1731
        %v1733 = vrot.slane %v1720, %v1732
        %v1734 = vlaneseq
        %v1735 = vshrl.u32 %v1734, 7
        %v1736 = vsub.s32 3, %v1735
        %v1737 = vrot.slane %v1720, %v1736
        %v1738 = vlaneseq
        %v1739 = vshrl.u32 %v1738, 7
        %v1740 = vsub.s32 4, %v1739
        %v1741 = vrot.slane %v1720, %v1740
        %v1742 = vlaneseq
        %v1743 = vshrl.u32 %v1742, 7
        %v1744 = vsub.s32 5, %v1743
        %v1745 = vrot.slane %v1720, %v1744
        %v1746 = vlaneseq
        %v1747 = vshrl.u32 %v1746, 7
        %v1748 = vsub.s32 6, %v1747
        %v1749 = vrot.slane %v1720, %v1748
        %v1750 = vlaneseq
        %v1751 = vshrl.u32 %v1750, 7
        %v1752 = vsub.s32 7, %v1751
        %v1753 = vrot.slane %v1720, %v1752
        %v1762 = vmul.f32 %v1143, %v1725
        %v1763 = vmul.f32 %v1145, %v1729
        %v1764 = vmul.f32 %v1304, %v1733
        %v1765 = vmul.f32 %v1306, %v1737
        %v1766 = vmul.f32 %v1465, %v1741
        %v1767 = vmul.f32 %v1467, %v1745
        %v1768 = vmul.f32 %v1626, %v1749
        %v1769 = vmul.f32 %v1628, %v1753
        %v1770 = vmul.f32 %v1149, %v1725
        %v1771 = vmul.f32 %v1151, %v1729
        %v1772 = vmul.f32 %v1310, %v1733
        %v1773 = vmul.f32 %v1312, %v1737
        %v1774 = vmul.f32 %v1471, %v1741
        %v1775 = vmul.f32 %v1473, %v1745
        %v1776 = vmul.f32 %v1632, %v1749
        %v1777 = vmul.f32 %v1634, %v1753
        %v1778 = vmul.f32 %v1155, %v1725
        %v1779 = vmul.f32 %v1157, %v1729
        %v1780 = vmul.f32 %v1316, %v1733
        %v1781 = vmul.f32 %v1318, %v1737
        %v1782 = vmul.f32 %v1477, %v1741
        %v1783 = vmul.f32 %v1479, %v1745
        %v1784 = vmul.f32 %v1638, %v1749
        %v1785 = vmul.f32 %v1640, %v1753
        %v1786 = vmul.f32 %v1161, %v1725
        %v1787 = vmul.f32 %v1163, %v1729
        %v1788 = vmul.f32 %v1322, %v1733
        %v1789 = vmul.f32 %v1324, %v1737
        %v1790 = vmul.f32 %v1483, %v1741
        %v1791 = vmul.f32 %v1485, %v1745
        %v1792 = vmul.f32 %v1644, %v1749
        %v1793 = vmul.f32 %v1646, %v1753
        %v1794 = vmul.f32 %v1167, %v1725
        %v1795 = vmul.f32 %v1169, %v1729
        %v1796 = vmul.f32 %v1328, %v1733
        %v1797 = vmul.f32 %v1330, %v1737
        %v1798 = vmul.f32 %v1489, %v1741
        %v1799 = vmul.f32 %v1491, %v1745
        %v1800 = vmul.f32 %v1650, %v1749
        %v1801 = vmul.f32 %v1652, %v1753
        %v1802 = vmul.f32 %v1173, %v1725
        %v1803 = vmul.f32 %v1175, %v1729
        %v1804 = vmul.f32 %v1334, %v1733
        %v1805 = vmul.f32 %v1336, %v1737
        %v1806 = vmul.f32 %v1495, %v1741
        %v1807 = vmul.f32 %v1497, %v1745
        %v1808 = vmul.f32 %v1656, %v1749
        %v1809 = vmul.f32 %v1658, %v1753
        %v1810 = vmul.f32 %v1179, %v1725
        %v1811 = vmul.f32 %v1181, %v1729
        %v1812 = vmul.f32 %v1340, %v1733
        %v1813 = vmul.f32 %v1342, %v1737
        %v1814 = vmul.f32 %v1501, %v1741
        %v1815 = vmul.f32 %v1503, %v1745
        %v1816 = vmul.f32 %v1662, %v1749
        %v1817 = vmul.f32 %v1664, %v1753
        %v1818 = vmul.f32 %v1185, %v1725
        %v1819 = vmul.f32 %v1187, %v1729
        %v1820 = vmul.f32 %v1346, %v1733
        %v1821 = vmul.f32 %v1348, %v1737
        %v1822 = vmul.f32 %v1507, %v1741
        %v1823 = vmul.f32 %v1509, %v1745
        %v1824 = vmul.f32 %v1668, %v1749
        %v1825 = vmul.f32 %v1670, %v1753
        %v1826 = vmul.f32 %v1191, %v1725
        %v1827 = vmul.f32 %v1193, %v1729
        %v1828 = vmul.f32 %v1352, %v1733
        %v1829 = vmul.f32 %v1354, %v1737
        %v1830 = vmul.f32 %v1513, %v1741
        %v1831 = vmul.f32 %v1515, %v1745
        %v1832 = vmul.f32 %v1674, %v1749
        %v1833 = vmul.f32 %v1676, %v1753
        %v1834 = vmul.f32 %v1197, %v1725
        %v1835 = vmul.f32 %v1199, %v1729
        %v1836 = vmul.f32 %v1358, %v1733
        %v1837 = vmul.f32 %v1360, %v1737
        %v1838 = vmul.f32 %v1519, %v1741
        %v1839 = vmul.f32 %v1521, %v1745
        %v1840 = vmul.f32 %v1680, %v1749
        %v1841 = vmul.f32 %v1682, %v1753
        %v1842 = vmul.f32 %v1203, %v1725
        %v1843 = vmul.f32 %v1205, %v1729
        %v1844 = vmul.f32 %v1364, %v1733
        %v1845 = vmul.f32 %v1366, %v1737
        %v1846 = vmul.f32 %v1525, %v1741
        %v1847 = vmul.f32 %v1527, %v1745
        %v1848 = vmul.f32 %v1686, %v1749
        %v1849 = vmul.f32 %v1688, %v1753
        %v1850 = vmul.f32 %v1209, %v1725
        %v1851 = vmul.f32 %v1211, %v1729
        %v1852 = vmul.f32 %v1370, %v1733
        %v1853 = vmul.f32 %v1372, %v1737
        %v1854 = vmul.f32 %v1531, %v1741
        %v1855 = vmul.f32 %v1533, %v1745
        %v1856 = vmul.f32 %v1692, %v1749
        %v1857 = vmul.f32 %v1694, %v1753
        %v1858 = vmul.f32 %v1215, %v1725
        %v1859 = vmul.f32 %v1217, %v1729
        %v1860 = vmul.f32 %v1376, %v1733
        %v1861 = vmul.f32 %v1378, %v1737
        %v1862 = vmul.f32 %v1537, %v1741
        %v1863 = vmul.f32 %v1539, %v1745
        %v1864 = vmul.f32 %v1698, %v1749
        %v1865 = vmul.f32 %v1700, %v1753
        %v1866 = vmul.f32 %v1221, %v1725
        %v1867 = vmul.f32 %v1223, %v1729
        %v1868 = vmul.f32 %v1382, %v1733
        %v1869 = vmul.f32 %v1384, %v1737
        %v1870 = vmul.f32 %v1543, %v1741
        %v1871 = vmul.f32 %v1545, %v1745
        %v1872 = vmul.f32 %v1704, %v1749
        %v1873 = vmul.f32 %v1706, %v1753
        %v1874 = vmul.f32 %v1227, %v1725
        %v1875 = vmul.f32 %v1229, %v1729
        %v1876 = vmul.f32 %v1388, %v1733
        %v1877 = vmul.f32 %v1390, %v1737
        %v1878 = vmul.f32 %v1549, %v1741
        %v1879 = vmul.f32 %v1551, %v1745
        %v1880 = vmul.f32 %v1710, %v1749
        %v1881 = vmul.f32 %v1712, %v1753
        %v1882 = vmul.f32 %v1233, %v1725
        %v1883 = vmul.f32 %v1235, %v1729
        %v1884 = vmul.f32 %v1394, %v1733
        %v1885 = vmul.f32 %v1396, %v1737
        %v1886 = vmul.f32 %v1555, %v1741
        %v1887 = vmul.f32 %v1557, %v1745
        %v1888 = vmul.f32 %v1716, %v1749
        %v1889 = vmul.f32 %v1718, %v1753
        %v1890 = vld [vmem:[%s9] sm:$0xff]
        %v1892 = vlaneseq
        %v1893 = vshrl.u32 %v1892, 7
        %v1894 = vsub.s32 0, %v1893
        %v1895 = vrot.slane %v1890, %v1894
        %v1896 = vlaneseq
        %v1897 = vshrl.u32 %v1896, 7
        %v1898 = vsub.s32 1, %v1897
        %v1899 = vrot.slane %v1890, %v1898
        %v1900 = vlaneseq
        %v1901 = vshrl.u32 %v1900, 7
        %v1902 = vsub.s32 2, %v1901
        %v1903 = vrot.slane %v1890, %v1902
        %v1904 = vlaneseq
        %v1905 = vshrl.u32 %v1904, 7
        %v1906 = vsub.s32 3, %v1905
        %v1907 = vrot.slane %v1890, %v1906
        %v1908 = vlaneseq
        %v1909 = vshrl.u32 %v1908, 7
        %v1910 = vsub.s32 4, %v1909
        %v1911 = vrot.slane %v1890, %v1910
        %v1912 = vlaneseq
        %v1913 = vshrl.u32 %v1912, 7
        %v1914 = vsub.s32 5, %v1913
        %v1915 = vrot.slane %v1890, %v1914
        %v1916 = vlaneseq
        %v1917 = vshrl.u32 %v1916, 7
        %v1918 = vsub.s32 6, %v1917
        %v1919 = vrot.slane %v1890, %v1918
        %v1920 = vlaneseq
        %v1921 = vshrl.u32 %v1920, 7
        %v1922 = vsub.s32 7, %v1921
        %v1923 = vrot.slane %v1890, %v1922
        %v1932 = vadd.f32 %v1762, %v1895
        %v1933 = vadd.f32 %v1763, %v1899
        %v1934 = vadd.f32 %v1764, %v1903
        %v1935 = vadd.f32 %v1765, %v1907
        %v1936 = vadd.f32 %v1766, %v1911
        %v1937 = vadd.f32 %v1767, %v1915
        %v1938 = vadd.f32 %v1768, %v1919
        %v1939 = vadd.f32 %v1769, %v1923
        %v1940 = vadd.f32 %v1770, %v1895
        %v1941 = vadd.f32 %v1771, %v1899
        %v1942 = vadd.f32 %v1772, %v1903
        %v1943 = vadd.f32 %v1773, %v1907
        %v1944 = vadd.f32 %v1774, %v1911
        %v1945 = vadd.f32 %v1775, %v1915
        %v1946 = vadd.f32 %v1776, %v1919
        %v1947 = vadd.f32 %v1777, %v1923
        %v1948 = vadd.f32 %v1778, %v1895
        %v1949 = vadd.f32 %v1779, %v1899
        %v1950 = vadd.f32 %v1780, %v1903
        %v1951 = vadd.f32 %v1781, %v1907
        %v1952 = vadd.f32 %v1782, %v1911
        %v1953 = vadd.f32 %v1783, %v1915
        %v1954 = vadd.f32 %v1784, %v1919
        %v1955 = vadd.f32 %v1785, %v1923
        %v1956 = vadd.f32 %v1786, %v1895
        %v1957 = vadd.f32 %v1787, %v1899
        %v1958 = vadd.f32 %v1788, %v1903
        %v1959 = vadd.f32 %v1789, %v1907
        %v1960 = vadd.f32 %v1790, %v1911
        %v1961 = vadd.f32 %v1791, %v1915
        %v1962 = vadd.f32 %v1792, %v1919
        %v1963 = vadd.f32 %v1793, %v1923
        %v1964 = vadd.f32 %v1794, %v1895
        %v1965 = vadd.f32 %v1795, %v1899
        %v1966 = vadd.f32 %v1796, %v1903
        %v1967 = vadd.f32 %v1797, %v1907
        %v1968 = vadd.f32 %v1798, %v1911
        %v1969 = vadd.f32 %v1799, %v1915
        %v1970 = vadd.f32 %v1800, %v1919
        %v1971 = vadd.f32 %v1801, %v1923
        %v1972 = vadd.f32 %v1802, %v1895
        %v1973 = vadd.f32 %v1803, %v1899
        %v1974 = vadd.f32 %v1804, %v1903
        %v1975 = vadd.f32 %v1805, %v1907
        %v1976 = vadd.f32 %v1806, %v1911
        %v1977 = vadd.f32 %v1807, %v1915
        %v1978 = vadd.f32 %v1808, %v1919
        %v1979 = vadd.f32 %v1809, %v1923
        %v1980 = vadd.f32 %v1810, %v1895
        %v1981 = vadd.f32 %v1811, %v1899
        %v1982 = vadd.f32 %v1812, %v1903
        %v1983 = vadd.f32 %v1813, %v1907
        %v1984 = vadd.f32 %v1814, %v1911
        %v1985 = vadd.f32 %v1815, %v1915
        %v1986 = vadd.f32 %v1816, %v1919
        %v1987 = vadd.f32 %v1817, %v1923
        %v1988 = vadd.f32 %v1818, %v1895
        %v1989 = vadd.f32 %v1819, %v1899
        %v1990 = vadd.f32 %v1820, %v1903
        %v1991 = vadd.f32 %v1821, %v1907
        %v1992 = vadd.f32 %v1822, %v1911
        %v1993 = vadd.f32 %v1823, %v1915
        %v1994 = vadd.f32 %v1824, %v1919
        %v1995 = vadd.f32 %v1825, %v1923
        %v1996 = vadd.f32 %v1826, %v1895
        %v1997 = vadd.f32 %v1827, %v1899
        %v1998 = vadd.f32 %v1828, %v1903
        %v1999 = vadd.f32 %v1829, %v1907
        %v2000 = vadd.f32 %v1830, %v1911
        %v2001 = vadd.f32 %v1831, %v1915
        %v2002 = vadd.f32 %v1832, %v1919
        %v2003 = vadd.f32 %v1833, %v1923
        %v2004 = vadd.f32 %v1834, %v1895
        %v2005 = vadd.f32 %v1835, %v1899
        %v2006 = vadd.f32 %v1836, %v1903
        %v2007 = vadd.f32 %v1837, %v1907
        %v2008 = vadd.f32 %v1838, %v1911
        %v2009 = vadd.f32 %v1839, %v1915
        %v2010 = vadd.f32 %v1840, %v1919
        %v2011 = vadd.f32 %v1841, %v1923
        %v2012 = vadd.f32 %v1842, %v1895
        %v2013 = vadd.f32 %v1843, %v1899
        %v2014 = vadd.f32 %v1844, %v1903
        %v2015 = vadd.f32 %v1845, %v1907
        %v2016 = vadd.f32 %v1846, %v1911
        %v2017 = vadd.f32 %v1847, %v1915
        %v2018 = vadd.f32 %v1848, %v1919
        %v2019 = vadd.f32 %v1849, %v1923
        %v2020 = vadd.f32 %v1850, %v1895
        %v2021 = vadd.f32 %v1851, %v1899
        %v2022 = vadd.f32 %v1852, %v1903
        %v2023 = vadd.f32 %v1853, %v1907
        %v2024 = vadd.f32 %v1854, %v1911
        %v2025 = vadd.f32 %v1855, %v1915
        %v2026 = vadd.f32 %v1856, %v1919
        %v2027 = vadd.f32 %v1857, %v1923
        %v2028 = vadd.f32 %v1858, %v1895
        %v2029 = vadd.f32 %v1859, %v1899
        %v2030 = vadd.f32 %v1860, %v1903
        %v2031 = vadd.f32 %v1861, %v1907
        %v2032 = vadd.f32 %v1862, %v1911
        %v2033 = vadd.f32 %v1863, %v1915
        %v2034 = vadd.f32 %v1864, %v1919
        %v2035 = vadd.f32 %v1865, %v1923
        %v2036 = vadd.f32 %v1866, %v1895
        %v2037 = vadd.f32 %v1867, %v1899
        %v2038 = vadd.f32 %v1868, %v1903
        %v2039 = vadd.f32 %v1869, %v1907
        %v2040 = vadd.f32 %v1870, %v1911
        %v2041 = vadd.f32 %v1871, %v1915
        %v2042 = vadd.f32 %v1872, %v1919
        %v2043 = vadd.f32 %v1873, %v1923
        %v2044 = vadd.f32 %v1874, %v1895
        %v2045 = vadd.f32 %v1875, %v1899
        %v2046 = vadd.f32 %v1876, %v1903
        %v2047 = vadd.f32 %v1877, %v1907
        %v2048 = vadd.f32 %v1878, %v1911
        %v2049 = vadd.f32 %v1879, %v1915
        %v2050 = vadd.f32 %v1880, %v1919
        %v2051 = vadd.f32 %v1881, %v1923
        %v2052 = vadd.f32 %v1882, %v1895
        %v2053 = vadd.f32 %v1883, %v1899
        %v2054 = vadd.f32 %v1884, %v1903
        %v2055 = vadd.f32 %v1885, %v1907
        %v2056 = vadd.f32 %v1886, %v1911
        %v2057 = vadd.f32 %v1887, %v1915
        %v2058 = vadd.f32 %v1888, %v1919
        %v2059 = vadd.f32 %v1889, %v1923
        %v2060 = vmax.f32 %v1932, 0.0
        %v2061 = vmax.f32 %v1933, 0.0
        %v2062 = vmax.f32 %v1934, 0.0
        %v2063 = vmax.f32 %v1935, 0.0
        %v2064 = vmax.f32 %v1936, 0.0
        %v2065 = vmax.f32 %v1937, 0.0
        %v2066 = vmax.f32 %v1938, 0.0
        %v2067 = vmax.f32 %v1939, 0.0
        %v2068 = vmax.f32 %v1940, 0.0
        %v2069 = vmax.f32 %v1941, 0.0
        %v2070 = vmax.f32 %v1942, 0.0
        %v2071 = vmax.f32 %v1943, 0.0
        %v2072 = vmax.f32 %v1944, 0.0
        %v2073 = vmax.f32 %v1945, 0.0
        %v2074 = vmax.f32 %v1946, 0.0
        %v2075 = vmax.f32 %v1947, 0.0
        %v2076 = vmax.f32 %v1948, 0.0
        %v2077 = vmax.f32 %v1949, 0.0
        %v2078 = vmax.f32 %v1950, 0.0
        %v2079 = vmax.f32 %v1951, 0.0
        %v2080 = vmax.f32 %v1952, 0.0
        %v2081 = vmax.f32 %v1953, 0.0
        %v2082 = vmax.f32 %v1954, 0.0
        %v2083 = vmax.f32 %v1955, 0.0
        %v2084 = vmax.f32 %v1956, 0.0
        %v2085 = vmax.f32 %v1957, 0.0
        %v2086 = vmax.f32 %v1958, 0.0
        %v2087 = vmax.f32 %v1959, 0.0
        %v2088 = vmax.f32 %v1960, 0.0
        %v2089 = vmax.f32 %v1961, 0.0
        %v2090 = vmax.f32 %v1962, 0.0
        %v2091 = vmax.f32 %v1963, 0.0
        %v2092 = vmax.f32 %v1964, 0.0
        %v2093 = vmax.f32 %v1965, 0.0
        %v2094 = vmax.f32 %v1966, 0.0
        %v2095 = vmax.f32 %v1967, 0.0
        %v2096 = vmax.f32 %v1968, 0.0
        %v2097 = vmax.f32 %v1969, 0.0
        %v2098 = vmax.f32 %v1970, 0.0
        %v2099 = vmax.f32 %v1971, 0.0
        %v2100 = vmax.f32 %v1972, 0.0
        %v2101 = vmax.f32 %v1973, 0.0
        %v2102 = vmax.f32 %v1974, 0.0
        %v2103 = vmax.f32 %v1975, 0.0
        %v2104 = vmax.f32 %v1976, 0.0
        %v2105 = vmax.f32 %v1977, 0.0
        %v2106 = vmax.f32 %v1978, 0.0
        %v2107 = vmax.f32 %v1979, 0.0
        %v2108 = vmax.f32 %v1980, 0.0
        %v2109 = vmax.f32 %v1981, 0.0
        %v2110 = vmax.f32 %v1982, 0.0
        %v2111 = vmax.f32 %v1983, 0.0
        %v2112 = vmax.f32 %v1984, 0.0
        %v2113 = vmax.f32 %v1985, 0.0
        %v2114 = vmax.f32 %v1986, 0.0
        %v2115 = vmax.f32 %v1987, 0.0
        %v2116 = vmax.f32 %v1988, 0.0
        %v2117 = vmax.f32 %v1989, 0.0
        %v2118 = vmax.f32 %v1990, 0.0
        %v2119 = vmax.f32 %v1991, 0.0
        %v2120 = vmax.f32 %v1992, 0.0
        %v2121 = vmax.f32 %v1993, 0.0
        %v2122 = vmax.f32 %v1994, 0.0
        %v2123 = vmax.f32 %v1995, 0.0
        %v2124 = vmax.f32 %v1996, 0.0
        %v2125 = vmax.f32 %v1997, 0.0
        %v2126 = vmax.f32 %v1998, 0.0
        %v2127 = vmax.f32 %v1999, 0.0
        %v2128 = vmax.f32 %v2000, 0.0
        %v2129 = vmax.f32 %v2001, 0.0
        %v2130 = vmax.f32 %v2002, 0.0
        %v2131 = vmax.f32 %v2003, 0.0
        %v2132 = vmax.f32 %v2004, 0.0
        %v2133 = vmax.f32 %v2005, 0.0
        %v2134 = vmax.f32 %v2006, 0.0
        %v2135 = vmax.f32 %v2007, 0.0
        %v2136 = vmax.f32 %v2008, 0.0
        %v2137 = vmax.f32 %v2009, 0.0
        %v2138 = vmax.f32 %v2010, 0.0
        %v2139 = vmax.f32 %v2011, 0.0
        %v2140 = vmax.f32 %v2012, 0.0
        %v2141 = vmax.f32 %v2013, 0.0
        %v2142 = vmax.f32 %v2014, 0.0
        %v2143 = vmax.f32 %v2015, 0.0
        %v2144 = vmax.f32 %v2016, 0.0
        %v2145 = vmax.f32 %v2017, 0.0
        %v2146 = vmax.f32 %v2018, 0.0
        %v2147 = vmax.f32 %v2019, 0.0
        %v2148 = vmax.f32 %v2020, 0.0
        %v2149 = vmax.f32 %v2021, 0.0
        %v2150 = vmax.f32 %v2022, 0.0
        %v2151 = vmax.f32 %v2023, 0.0
        %v2152 = vmax.f32 %v2024, 0.0
        %v2153 = vmax.f32 %v2025, 0.0
        %v2154 = vmax.f32 %v2026, 0.0
        %v2155 = vmax.f32 %v2027, 0.0
        %v2156 = vmax.f32 %v2028, 0.0
        %v2157 = vmax.f32 %v2029, 0.0
        %v2158 = vmax.f32 %v2030, 0.0
        %v2159 = vmax.f32 %v2031, 0.0
        %v2160 = vmax.f32 %v2032, 0.0
        %v2161 = vmax.f32 %v2033, 0.0
        %v2162 = vmax.f32 %v2034, 0.0
        %v2163 = vmax.f32 %v2035, 0.0
        %v2164 = vmax.f32 %v2036, 0.0
        %v2165 = vmax.f32 %v2037, 0.0
        %v2166 = vmax.f32 %v2038, 0.0
        %v2167 = vmax.f32 %v2039, 0.0
        %v2168 = vmax.f32 %v2040, 0.0
        %v2169 = vmax.f32 %v2041, 0.0
        %v2170 = vmax.f32 %v2042, 0.0
        %v2171 = vmax.f32 %v2043, 0.0
        %v2172 = vmax.f32 %v2044, 0.0
        %v2173 = vmax.f32 %v2045, 0.0
        %v2174 = vmax.f32 %v2046, 0.0
        %v2175 = vmax.f32 %v2047, 0.0
        %v2176 = vmax.f32 %v2048, 0.0
        %v2177 = vmax.f32 %v2049, 0.0
        %v2178 = vmax.f32 %v2050, 0.0
        %v2179 = vmax.f32 %v2051, 0.0
        %v2180 = vmax.f32 %v2052, 0.0
        %v2181 = vmax.f32 %v2053, 0.0
        %v2182 = vmax.f32 %v2054, 0.0
        %v2183 = vmax.f32 %v2055, 0.0
        %v2184 = vmax.f32 %v2056, 0.0
        %v2185 = vmax.f32 %v2057, 0.0
        %v2186 = vmax.f32 %v2058, 0.0
        %v2187 = vmax.f32 %v2059, 0.0
        %v2188 = vlaneseq
        %v2189 = vshrl.u32 %v2188, 7
        %v2190 = vadd.s32 %v2189, 8
        %v2191 = vadd.s32 %v2189, 16
        %v2192 = vadd.s32 %v2189, 24
        %v2193 = vadd.s32 %v2189, 32
        %v2194 = vadd.s32 %v2189, 40
        %v2195 = vadd.s32 %v2189, 48
        %v2196 = vadd.s32 %v2189, 56
        %v2197 = vadd.s32 %v2189, 64
        %v2198 = vadd.s32 %v2189, 72
        %v2199 = vadd.s32 %v2189, 80
        %v2200 = vadd.s32 %v2189, 88
        %v2201 = vadd.s32 %v2189, 96
        %v2202 = vadd.s32 %v2189, 104
        %v2203 = vadd.s32 %v2189, 112
        %v2204 = vadd.s32 %v2189, 120
        %s2205 = smul.u32 %s32, 128
        %v2206 = vstv %s2205
        %v2207 = vadd.s32 %v2189, %v2206
        %v2208 = vadd.s32 %v2190, %v2206
        %v2209 = vadd.s32 %v2191, %v2206
        %v2210 = vadd.s32 %v2192, %v2206
        %v2211 = vadd.s32 %v2193, %v2206
        %v2212 = vadd.s32 %v2194, %v2206
        %v2213 = vadd.s32 %v2195, %v2206
        %v2214 = vadd.s32 %v2196, %v2206
        %v2215 = vadd.s32 %v2197, %v2206
        %v2216 = vadd.s32 %v2198, %v2206
        %v2217 = vadd.s32 %v2199, %v2206
        %v2218 = vadd.s32 %v2200, %v2206
        %v2219 = vadd.s32 %v2201, %v2206
        %v2220 = vadd.s32 %v2202, %v2206
        %v2221 = vadd.s32 %v2203, %v2206
        %v2222 = vadd.s32 %v2204, %v2206
        %vm2223 = vcmp.lt.s32.totalorder %v2207, 64
        %vm2224 = vcmp.lt.s32.totalorder %v2208, 64
        %vm2225 = vcmp.lt.s32.totalorder %v2209, 64
        %vm2226 = vcmp.lt.s32.totalorder %v2210, 64
        %vm2227 = vcmp.lt.s32.totalorder %v2211, 64
        %vm2228 = vcmp.lt.s32.totalorder %v2212, 64
        %vm2229 = vcmp.lt.s32.totalorder %v2213, 64
        %vm2230 = vcmp.lt.s32.totalorder %v2214, 64
        %vm2231 = vcmp.lt.s32.totalorder %v2215, 64
        %vm2232 = vcmp.lt.s32.totalorder %v2216, 64
        %vm2233 = vcmp.lt.s32.totalorder %v2217, 64
        %vm2234 = vcmp.lt.s32.totalorder %v2218, 64
        %vm2235 = vcmp.lt.s32.totalorder %v2219, 64
        %vm2236 = vcmp.lt.s32.totalorder %v2220, 64
        %vm2237 = vcmp.lt.s32.totalorder %v2221, 64
        %vm2238 = vcmp.lt.s32.totalorder %v2222, 64
        %v2239 = vsel %vm2223, %v2060, -1e+30
        %v2240 = vsel %vm2223, %v2061, -1e+30
        %v2241 = vsel %vm2223, %v2062, -1e+30
        %v2242 = vsel %vm2223, %v2063, -1e+30
        %v2243 = vsel %vm2223, %v2064, -1e+30
        %v2244 = vsel %vm2223, %v2065, -1e+30
        %v2245 = vsel %vm2223, %v2066, -1e+30
        %v2246 = vsel %vm2223, %v2067, -1e+30
        %v2247 = vsel %vm2224, %v2068, -1e+30
        %v2248 = vsel %vm2224, %v2069, -1e+30
        %v2249 = vsel %vm2224, %v2070, -1e+30
        %v2250 = vsel %vm2224, %v2071, -1e+30
        %v2251 = vsel %vm2224, %v2072, -1e+30
        %v2252 = vsel %vm2224, %v2073, -1e+30
        %v2253 = vsel %vm2224, %v2074, -1e+30
        %v2254 = vsel %vm2224, %v2075, -1e+30
        %v2255 = vsel %vm2225, %v2076, -1e+30
        %v2256 = vsel %vm2225, %v2077, -1e+30
        %v2257 = vsel %vm2225, %v2078, -1e+30
        %v2258 = vsel %vm2225, %v2079, -1e+30
        %v2259 = vsel %vm2225, %v2080, -1e+30
        %v2260 = vsel %vm2225, %v2081, -1e+30
        %v2261 = vsel %vm2225, %v2082, -1e+30
        %v2262 = vsel %vm2225, %v2083, -1e+30
        %v2263 = vsel %vm2226, %v2084, -1e+30
        %v2264 = vsel %vm2226, %v2085, -1e+30
        %v2265 = vsel %vm2226, %v2086, -1e+30
        %v2266 = vsel %vm2226, %v2087, -1e+30
        %v2267 = vsel %vm2226, %v2088, -1e+30
        %v2268 = vsel %vm2226, %v2089, -1e+30
        %v2269 = vsel %vm2226, %v2090, -1e+30
        %v2270 = vsel %vm2226, %v2091, -1e+30
        %v2271 = vsel %vm2227, %v2092, -1e+30
        %v2272 = vsel %vm2227, %v2093, -1e+30
        %v2273 = vsel %vm2227, %v2094, -1e+30
        %v2274 = vsel %vm2227, %v2095, -1e+30
        %v2275 = vsel %vm2227, %v2096, -1e+30
        %v2276 = vsel %vm2227, %v2097, -1e+30
        %v2277 = vsel %vm2227, %v2098, -1e+30
        %v2278 = vsel %vm2227, %v2099, -1e+30
        %v2279 = vsel %vm2228, %v2100, -1e+30
        %v2280 = vsel %vm2228, %v2101, -1e+30
        %v2281 = vsel %vm2228, %v2102, -1e+30
        %v2282 = vsel %vm2228, %v2103, -1e+30
        %v2283 = vsel %vm2228, %v2104, -1e+30
        %v2284 = vsel %vm2228, %v2105, -1e+30
        %v2285 = vsel %vm2228, %v2106, -1e+30
        %v2286 = vsel %vm2228, %v2107, -1e+30
        %v2287 = vsel %vm2229, %v2108, -1e+30
        %v2288 = vsel %vm2229, %v2109, -1e+30
        %v2289 = vsel %vm2229, %v2110, -1e+30
        %v2290 = vsel %vm2229, %v2111, -1e+30
        %v2291 = vsel %vm2229, %v2112, -1e+30
        %v2292 = vsel %vm2229, %v2113, -1e+30
        %v2293 = vsel %vm2229, %v2114, -1e+30
        %v2294 = vsel %vm2229, %v2115, -1e+30
        %v2295 = vsel %vm2230, %v2116, -1e+30
        %v2296 = vsel %vm2230, %v2117, -1e+30
        %v2297 = vsel %vm2230, %v2118, -1e+30
        %v2298 = vsel %vm2230, %v2119, -1e+30
        %v2299 = vsel %vm2230, %v2120, -1e+30
        %v2300 = vsel %vm2230, %v2121, -1e+30
        %v2301 = vsel %vm2230, %v2122, -1e+30
        %v2302 = vsel %vm2230, %v2123, -1e+30
        %v2303 = vsel %vm2231, %v2124, -1e+30
        %v2304 = vsel %vm2231, %v2125, -1e+30
        %v2305 = vsel %vm2231, %v2126, -1e+30
        %v2306 = vsel %vm2231, %v2127, -1e+30
        %v2307 = vsel %vm2231, %v2128, -1e+30
        %v2308 = vsel %vm2231, %v2129, -1e+30
        %v2309 = vsel %vm2231, %v2130, -1e+30
        %v2310 = vsel %vm2231, %v2131, -1e+30
        %v2311 = vsel %vm2232, %v2132, -1e+30
        %v2312 = vsel %vm2232, %v2133, -1e+30
        %v2313 = vsel %vm2232, %v2134, -1e+30
        %v2314 = vsel %vm2232, %v2135, -1e+30
        %v2315 = vsel %vm2232, %v2136, -1e+30
        %v2316 = vsel %vm2232, %v2137, -1e+30
        %v2317 = vsel %vm2232, %v2138, -1e+30
        %v2318 = vsel %vm2232, %v2139, -1e+30
        %v2319 = vsel %vm2233, %v2140, -1e+30
        %v2320 = vsel %vm2233, %v2141, -1e+30
        %v2321 = vsel %vm2233, %v2142, -1e+30
        %v2322 = vsel %vm2233, %v2143, -1e+30
        %v2323 = vsel %vm2233, %v2144, -1e+30
        %v2324 = vsel %vm2233, %v2145, -1e+30
        %v2325 = vsel %vm2233, %v2146, -1e+30
        %v2326 = vsel %vm2233, %v2147, -1e+30
        %v2327 = vsel %vm2234, %v2148, -1e+30
        %v2328 = vsel %vm2234, %v2149, -1e+30
        %v2329 = vsel %vm2234, %v2150, -1e+30
        %v2330 = vsel %vm2234, %v2151, -1e+30
        %v2331 = vsel %vm2234, %v2152, -1e+30
        %v2332 = vsel %vm2234, %v2153, -1e+30
        %v2333 = vsel %vm2234, %v2154, -1e+30
        %v2334 = vsel %vm2234, %v2155, -1e+30
        %v2335 = vsel %vm2235, %v2156, -1e+30
        %v2336 = vsel %vm2235, %v2157, -1e+30
        %v2337 = vsel %vm2235, %v2158, -1e+30
        %v2338 = vsel %vm2235, %v2159, -1e+30
        %v2339 = vsel %vm2235, %v2160, -1e+30
        %v2340 = vsel %vm2235, %v2161, -1e+30
        %v2341 = vsel %vm2235, %v2162, -1e+30
        %v2342 = vsel %vm2235, %v2163, -1e+30
        %v2343 = vsel %vm2236, %v2164, -1e+30
        %v2344 = vsel %vm2236, %v2165, -1e+30
        %v2345 = vsel %vm2236, %v2166, -1e+30
        %v2346 = vsel %vm2236, %v2167, -1e+30
        %v2347 = vsel %vm2236, %v2168, -1e+30
        %v2348 = vsel %vm2236, %v2169, -1e+30
        %v2349 = vsel %vm2236, %v2170, -1e+30
        %v2350 = vsel %vm2236, %v2171, -1e+30
        %v2351 = vsel %vm2237, %v2172, -1e+30
        %v2352 = vsel %vm2237, %v2173, -1e+30
        %v2353 = vsel %vm2237, %v2174, -1e+30
        %v2354 = vsel %vm2237, %v2175, -1e+30
        %v2355 = vsel %vm2237, %v2176, -1e+30
        %v2356 = vsel %vm2237, %v2177, -1e+30
        %v2357 = vsel %vm2237, %v2178, -1e+30
        %v2358 = vsel %vm2237, %v2179, -1e+30
        %v2359 = vsel %vm2238, %v2180, -1e+30
        %v2360 = vsel %vm2238, %v2181, -1e+30
        %v2361 = vsel %vm2238, %v2182, -1e+30
        %v2362 = vsel %vm2238, %v2183, -1e+30
        %v2363 = vsel %vm2238, %v2184, -1e+30
        %v2364 = vsel %vm2238, %v2185, -1e+30
        %v2365 = vsel %vm2238, %v2186, -1e+30
        %v2366 = vsel %vm2238, %v2187, -1e+30
        %v2367 = vmax.f32 %v2239, %v2247
        %v2368 = vmax.f32 %v2367, %v2255
        %v2369 = vmax.f32 %v2368, %v2263
        %v2370 = vmax.f32 %v2369, %v2271
        %v2371 = vmax.f32 %v2370, %v2279
        %v2372 = vmax.f32 %v2371, %v2287
        %v2373 = vmax.f32 %v2372, %v2295
        %v2374 = vmax.f32 %v2373, %v2303
        %v2375 = vmax.f32 %v2374, %v2311
        %v2376 = vmax.f32 %v2375, %v2319
        %v2377 = vmax.f32 %v2376, %v2327
        %v2378 = vmax.f32 %v2377, %v2335
        %v2379 = vmax.f32 %v2378, %v2343
        %v2380 = vmax.f32 %v2379, %v2351
        %v2381 = vmax.f32 %v2380, %v2359
        %v2382 = vrot.slane %v2381, 4
        %v2383 = vmax.f32 %v2381, %v2382
        %v2384 = vrot.slane %v2383, 2
        %v2385 = vmax.f32 %v2383, %v2384
        %v2386 = vrot.slane %v2385, 1
        %v2387 = vmax.f32 %v2385, %v2386
        %v2388 = vmax.f32 %v2240, %v2248
        %v2389 = vmax.f32 %v2388, %v2256
        %v2390 = vmax.f32 %v2389, %v2264
        %v2391 = vmax.f32 %v2390, %v2272
        %v2392 = vmax.f32 %v2391, %v2280
        %v2393 = vmax.f32 %v2392, %v2288
        %v2394 = vmax.f32 %v2393, %v2296
        %v2395 = vmax.f32 %v2394, %v2304
        %v2396 = vmax.f32 %v2395, %v2312
        %v2397 = vmax.f32 %v2396, %v2320
        %v2398 = vmax.f32 %v2397, %v2328
        %v2399 = vmax.f32 %v2398, %v2336
        %v2400 = vmax.f32 %v2399, %v2344
        %v2401 = vmax.f32 %v2400, %v2352
        %v2402 = vmax.f32 %v2401, %v2360
        %v2403 = vrot.slane %v2402, 4
        %v2404 = vmax.f32 %v2402, %v2403
        %v2405 = vrot.slane %v2404, 2
        %v2406 = vmax.f32 %v2404, %v2405
        %v2407 = vrot.slane %v2406, 1
        %v2408 = vmax.f32 %v2406, %v2407
        %v2409 = vmax.f32 %v2241, %v2249
        %v2410 = vmax.f32 %v2409, %v2257
        %v2411 = vmax.f32 %v2410, %v2265
        %v2412 = vmax.f32 %v2411, %v2273
        %v2413 = vmax.f32 %v2412, %v2281
        %v2414 = vmax.f32 %v2413, %v2289
        %v2415 = vmax.f32 %v2414, %v2297
        %v2416 = vmax.f32 %v2415, %v2305
        %v2417 = vmax.f32 %v2416, %v2313
        %v2418 = vmax.f32 %v2417, %v2321
        %v2419 = vmax.f32 %v2418, %v2329
        %v2420 = vmax.f32 %v2419, %v2337
        %v2421 = vmax.f32 %v2420, %v2345
        %v2422 = vmax.f32 %v2421, %v2353
        %v2423 = vmax.f32 %v2422, %v2361
        %v2424 = vrot.slane %v2423, 4
        %v2425 = vmax.f32 %v2423, %v2424
        %v2426 = vrot.slane %v2425, 2
        %v2427 = vmax.f32 %v2425, %v2426
        %v2428 = vrot.slane %v2427, 1
        %v2429 = vmax.f32 %v2427, %v2428
        %v2430 = vmax.f32 %v2242, %v2250
        %v2431 = vmax.f32 %v2430, %v2258
        %v2432 = vmax.f32 %v2431, %v2266
        %v2433 = vmax.f32 %v2432, %v2274
        %v2434 = vmax.f32 %v2433, %v2282
        %v2435 = vmax.f32 %v2434, %v2290
        %v2436 = vmax.f32 %v2435, %v2298
        %v2437 = vmax.f32 %v2436, %v2306
        %v2438 = vmax.f32 %v2437, %v2314
        %v2439 = vmax.f32 %v2438, %v2322
        %v2440 = vmax.f32 %v2439, %v2330
        %v2441 = vmax.f32 %v2440, %v2338
        %v2442 = vmax.f32 %v2441, %v2346
        %v2443 = vmax.f32 %v2442, %v2354
        %v2444 = vmax.f32 %v2443, %v2362
        %v2445 = vrot.slane %v2444, 4
        %v2446 = vmax.f32 %v2444, %v2445
        %v2447 = vrot.slane %v2446, 2
        %v2448 = vmax.f32 %v2446, %v2447
        %v2449 = vrot.slane %v2448, 1
        %v2450 = vmax.f32 %v2448, %v2449
        %v2451 = vmax.f32 %v2243, %v2251
        %v2452 = vmax.f32 %v2451, %v2259
        %v2453 = vmax.f32 %v2452, %v2267
        %v2454 = vmax.f32 %v2453, %v2275
        %v2455 = vmax.f32 %v2454, %v2283
        %v2456 = vmax.f32 %v2455, %v2291
        %v2457 = vmax.f32 %v2456, %v2299
        %v2458 = vmax.f32 %v2457, %v2307
        %v2459 = vmax.f32 %v2458, %v2315
        %v2460 = vmax.f32 %v2459, %v2323
        %v2461 = vmax.f32 %v2460, %v2331
        %v2462 = vmax.f32 %v2461, %v2339
        %v2463 = vmax.f32 %v2462, %v2347
        %v2464 = vmax.f32 %v2463, %v2355
        %v2465 = vmax.f32 %v2464, %v2363
        %v2466 = vrot.slane %v2465, 4
        %v2467 = vmax.f32 %v2465, %v2466
        %v2468 = vrot.slane %v2467, 2
        %v2469 = vmax.f32 %v2467, %v2468
        %v2470 = vrot.slane %v2469, 1
        %v2471 = vmax.f32 %v2469, %v2470
        %v2472 = vmax.f32 %v2244, %v2252
        %v2473 = vmax.f32 %v2472, %v2260
        %v2474 = vmax.f32 %v2473, %v2268
        %v2475 = vmax.f32 %v2474, %v2276
        %v2476 = vmax.f32 %v2475, %v2284
        %v2477 = vmax.f32 %v2476, %v2292
        %v2478 = vmax.f32 %v2477, %v2300
        %v2479 = vmax.f32 %v2478, %v2308
        %v2480 = vmax.f32 %v2479, %v2316
        %v2481 = vmax.f32 %v2480, %v2324
        %v2482 = vmax.f32 %v2481, %v2332
        %v2483 = vmax.f32 %v2482, %v2340
        %v2484 = vmax.f32 %v2483, %v2348
        %v2485 = vmax.f32 %v2484, %v2356
        %v2486 = vmax.f32 %v2485, %v2364
        %v2487 = vrot.slane %v2486, 4
        %v2488 = vmax.f32 %v2486, %v2487
        %v2489 = vrot.slane %v2488, 2
        %v2490 = vmax.f32 %v2488, %v2489
        %v2491 = vrot.slane %v2490, 1
        %v2492 = vmax.f32 %v2490, %v2491
        %v2493 = vmax.f32 %v2245, %v2253
        %v2494 = vmax.f32 %v2493, %v2261
        %v2495 = vmax.f32 %v2494, %v2269
        %v2496 = vmax.f32 %v2495, %v2277
        %v2497 = vmax.f32 %v2496, %v2285
        %v2498 = vmax.f32 %v2497, %v2293
        %v2499 = vmax.f32 %v2498, %v2301
        %v2500 = vmax.f32 %v2499, %v2309
        %v2501 = vmax.f32 %v2500, %v2317
        %v2502 = vmax.f32 %v2501, %v2325
        %v2503 = vmax.f32 %v2502, %v2333
        %v2504 = vmax.f32 %v2503, %v2341
        %v2505 = vmax.f32 %v2504, %v2349
        %v2506 = vmax.f32 %v2505, %v2357
        %v2507 = vmax.f32 %v2506, %v2365
        %v2508 = vrot.slane %v2507, 4
        %v2509 = vmax.f32 %v2507, %v2508
        %v2510 = vrot.slane %v2509, 2
        %v2511 = vmax.f32 %v2509, %v2510
        %v2512 = vrot.slane %v2511, 1
        %v2513 = vmax.f32 %v2511, %v2512
        %v2514 = vmax.f32 %v2246, %v2254
        %v2515 = vmax.f32 %v2514, %v2262
        %v2516 = vmax.f32 %v2515, %v2270
        %v2517 = vmax.f32 %v2516, %v2278
        %v2518 = vmax.f32 %v2517, %v2286
        %v2519 = vmax.f32 %v2518, %v2294
        %v2520 = vmax.f32 %v2519, %v2302
        %v2521 = vmax.f32 %v2520, %v2310
        %v2522 = vmax.f32 %v2521, %v2318
        %v2523 = vmax.f32 %v2522, %v2326
        %v2524 = vmax.f32 %v2523, %v2334
        %v2525 = vmax.f32 %v2524, %v2342
        %v2526 = vmax.f32 %v2525, %v2350
        %v2527 = vmax.f32 %v2526, %v2358
        %v2528 = vmax.f32 %v2527, %v2366
        %v2529 = vrot.slane %v2528, 4
        %v2530 = vmax.f32 %v2528, %v2529
        %v2531 = vrot.slane %v2530, 2
        %v2532 = vmax.f32 %v2530, %v2531
        %v2533 = vrot.slane %v2532, 1
        %v2534 = vmax.f32 %v2532, %v2533
        %p2535 = scmp.eq.s32.totalorder %s32, 0
        // Predicated region
        $region65: #{tpu_custom_call.1} parent=59 // pred_check
          %p2536 = pneg %p2535
        $region66: #{tpu_custom_call.1} parent=59 // pred_check_branch
          %2538 = sbr.rel (%p2536) target = $region68
        $region67: #{tpu_custom_call.1} parent=59 // pred_region
          %v2547 = vcombine.low %v2387, %v2408
          %v2548 = vcombine.low %v2429, %v2450
          %v2549 = vcombine.low %v2471, %v2492
          %v2550 = vcombine.low %v2513, %v2534
          %v2552 = vunpack.c.l.s4 1966171168
          %v2553 = vunpack.c.0.s8 %v2552
          %v2554 = vlaneseq
          %v2555 = vshrl.u32 %v2554, 7
          %v2556 = vsub.s32 %v2553, %v2555
          %v2557 = vrot.slane %v2547, %v2556
          %v2559 = vunpack.c.l.s4 1966171168
          %v2560 = vunpack.c.0.s8 %v2559
          %v2561 = vlaneseq
          %v2562 = vshrl.u32 %v2561, 7
          %v2563 = vsub.s32 %v2560, %v2562
          %v2564 = vrot.slane %v2548, %v2563
          %v2566 = vunpack.c.l.s4 1966171168
          %v2567 = vunpack.c.0.s8 %v2566
          %v2568 = vlaneseq
          %v2569 = vshrl.u32 %v2568, 7
          %v2570 = vsub.s32 %v2567, %v2569
          %v2571 = vrot.slane %v2549, %v2570
          %v2573 = vunpack.c.l.s4 1966171168
          %v2574 = vunpack.c.0.s8 %v2573
          %v2575 = vlaneseq
          %v2576 = vshrl.u32 %v2575, 7
          %v2577 = vsub.s32 %v2574, %v2576
          %v2578 = vrot.slane %v2550, %v2577
          %v2579 = vcombine.low %v2557, %v2564
          %v2580 = vcombine.low %v2571, %v2578
          %v2582 = vunpack.c.l.s4 1966171168
          %v2583 = vunpack.c.0.s8 %v2582
          %v2584 = vlaneseq
          %v2585 = vshrl.u32 %v2584, 7
          %v2586 = vsub.s32 %v2583, %v2585
          %v2587 = vrot.slane %v2579, %v2586
          %v2589 = vunpack.c.l.s4 1966171168
          %v2590 = vunpack.c.0.s8 %v2589
          %v2591 = vlaneseq
          %v2592 = vshrl.u32 %v2591, 7
          %v2593 = vsub.s32 %v2590, %v2592
          %v2594 = vrot.slane %v2580, %v2593
          %v2595 = vcombine.low %v2587, %v2594
          %2597 = vst [vmem:[%s399] sm:$0xff] %v2595
        $region68: #{tpu_custom_call.1} parent=59 // pred_fallthru
          _
        %p2598 = scmp.gt.s32.totalorder %s32, 0
        // Predicated region
        $region69: #{tpu_custom_call.1} parent=59 // pred_check
          %p2599 = pneg %p2598
        $region70: #{tpu_custom_call.1} parent=59 // pred_check_branch
          %2601 = sbr.rel (%p2599) target = $region72
        $region71: #{tpu_custom_call.1} parent=59 // pred_region
          %v2602 = vld [vmem:[%s399] sm:$0xff]
          %v2611 = vcombine.low %v2387, %v2408
          %v2612 = vcombine.low %v2429, %v2450
          %v2613 = vcombine.low %v2471, %v2492
          %v2614 = vcombine.low %v2513, %v2534
          %v2616 = vunpack.c.l.s4 1966171168
          %v2617 = vunpack.c.0.s8 %v2616
          %v2618 = vlaneseq
          %v2619 = vshrl.u32 %v2618, 7
          %v2620 = vsub.s32 %v2617, %v2619
          %v2621 = vrot.slane %v2611, %v2620
          %v2623 = vunpack.c.l.s4 1966171168
          %v2624 = vunpack.c.0.s8 %v2623
          %v2625 = vlaneseq
          %v2626 = vshrl.u32 %v2625, 7
          %v2627 = vsub.s32 %v2624, %v2626
          %v2628 = vrot.slane %v2612, %v2627
          %v2630 = vunpack.c.l.s4 1966171168
          %v2631 = vunpack.c.0.s8 %v2630
          %v2632 = vlaneseq
          %v2633 = vshrl.u32 %v2632, 7
          %v2634 = vsub.s32 %v2631, %v2633
          %v2635 = vrot.slane %v2613, %v2634
          %v2637 = vunpack.c.l.s4 1966171168
          %v2638 = vunpack.c.0.s8 %v2637
          %v2639 = vlaneseq
          %v2640 = vshrl.u32 %v2639, 7
          %v2641 = vsub.s32 %v2638, %v2640
          %v2642 = vrot.slane %v2614, %v2641
          %v2643 = vcombine.low %v2621, %v2628
          %v2644 = vcombine.low %v2635, %v2642
          %v2646 = vunpack.c.l.s4 1966171168
          %v2647 = vunpack.c.0.s8 %v2646
          %v2648 = vlaneseq
          %v2649 = vshrl.u32 %v2648, 7
          %v2650 = vsub.s32 %v2647, %v2649
          %v2651 = vrot.slane %v2643, %v2650
          %v2653 = vunpack.c.l.s4 1966171168
          %v2654 = vunpack.c.0.s8 %v2653
          %v2655 = vlaneseq
          %v2656 = vshrl.u32 %v2655, 7
          %v2657 = vsub.s32 %v2654, %v2656
          %v2658 = vrot.slane %v2644, %v2657
          %v2659 = vcombine.low %v2651, %v2658
          %v2661 = vmax.f32 %v2602, %v2659
          %2662 = vst [vmem:[%s399] sm:$0xff] %v2661
        $region72: #{tpu_custom_call.1} parent=59 // pred_fallthru
          _
        %s2663 = sand.u32 %s271, 1
        %s2664 = scalar_lea.sflag [#allocation4], %s2663
        %s2665 = sand.u32 %s271, 1
        %s2666 = smul.addr %s2665, 8
        %s2667 = scalar_lea.vmem [#allocation5], %s2666
        // Predicated region
        $region73: #{tpu_custom_call.1} parent=59 // pred_check
          %p2668 = pneg %p281
        $region74: #{tpu_custom_call.1} parent=59 // pred_check_branch
          %2670 = sbr.rel (%p2668) target = $region76
        $region75: #{tpu_custom_call.1} parent=59 // pred_region
          %s2671 = smul.u32 8, %s31
          %s2673 = ssub.s32 128, 128
          %2674 = vsyncadd %s2664, %s2673
          %s2675 = smul.addr %s30, 8
          %s2676 = sadd.s32 %s2671, %s2675
          %s2677 = smul.addr %s2676, 16
          %s2678 = scalar_lea.hbm %s10, %s2677
          %s2680 = sshll.u32 %s2667, 4
          %s2681 = int_to_ptr.vmem [resolvable:$true] %s2680
          %2683 = dma.vmem_to_hbm [thread:$0]  %s2681, 128, %s2678, %s2664
        $region76: #{tpu_custom_call.1} parent=59 // pred_fallthru
          _
      $region60: #{tpu_custom_call.1} parent=5 // pred_fallthru
        _
      %p2684 = scmp.le.s32.totalorder 2, %s20
      // Predicated region
      $region77: #{tpu_custom_call.1} parent=5 // pred_check
        %p2685 = pneg %p2684
      $region78: #{tpu_custom_call.1} parent=5 // pred_check_branch
        %2687 = sbr.rel (%p2685) target = $region80
      $region79: #{tpu_custom_call.1} parent=5 // pred_region
        %s2688 = ssub.s32 %s20, 2
        // Predicated region
        $region81: #{tpu_custom_call.1} parent=79 // pred_check
          %p2689 = pneg %p287
        $region82: #{tpu_custom_call.1} parent=79 // pred_check_branch
          %2691 = sbr.rel (%p2689) target = $region84
        $region83: #{tpu_custom_call.1} parent=79 // pred_region
          %s2692 = sand.u32 %s272, 1
          %s2693 = scalar_lea.sflag [#allocation4], %s2692
          %s2694 = sand.u32 %s272, 1
          %s2695 = smul.addr %s2694, 8
          %s2696 = scalar_lea.vmem [#allocation5], %s2695
          %2697 = dma.done %s2693, 128
        $region84: #{tpu_custom_call.1} parent=79 // pred_fallthru
          _
      $region80: #{tpu_custom_call.1} parent=5 // pred_fallthru
        _
    $region6: #{tpu_custom_call.1} parent=1 // loop_footer
      %s24 = sadd.s32 1, %s20
    $region7: #{tpu_custom_call.1} parent=1 // loop_footer_branch
      %19 = sbr.rel target = $region3
    $region8: #{tpu_custom_call.1} parent=1 // loop_exit
      _
    %2698 = vsyncpa [#allocation3], 1
    %s2699 = scalar_lea.sflag [#allocation3], 1
    %2700 = vsyncpa %s2699, 1
    %2701 = vsyncpa [#allocation4], 1
    %s2702 = scalar_lea.sflag [#allocation4], 1
    %2703 = vsyncpa %s2702, 1

</llo_original>
